<compile_context>
chip_gen: v6e
topology: v6e:2x2x1
jax: 0.10.0
libtpu: 0.0.40
codegen_flags: <defaults>
</compile_context>

<pallas_src>
from functools import partial

import numpy as np
import jax
import jax.numpy as jnp
from jax.experimental import pallas as pl
from jax.experimental.pallas import tpu as pltpu


def rae_kernel(x_ref, w1_ref, benc_ref, w23_ref, wo_ref, bo_ref, out_ref):
    x = x_ref[...]
    # encoder fc1 + relu (bias row 0 of the packed encoder-bias block)
    h1 = jnp.maximum(
        jnp.dot(x, w1_ref[...], preferred_element_type=jnp.float32)
        + benc_ref[0:1, :], 0.0)
    # fc2 (linear, no activation) fused with fc3 -> single matmul, then relu
    h3 = jnp.maximum(
        jnp.dot(h1, w23_ref[...], preferred_element_type=jnp.float32)
        + benc_ref[1:2, :], 0.0)
    # block-concatenated output linears (bias row 0, categ-mask row 1)
    o = jnp.dot(h3, wo_ref[...], preferred_element_type=jnp.float32) + bo_ref[0:1, :]
    mask = bo_ref[1:2, :]
    # cat_fout (sigmoid) only on categorical columns; real columns pass through.
    # (sigmoid -> EUP slot, select -> VPU slot; neither is the bottleneck.)
    out_ref[...] = jnp.where(mask > 0.5, jax.nn.sigmoid(o), o)


def _round_up(n, m):
    return ((n + m - 1) // m) * m


def _num_parallel_cores():
    """How many TensorCores a 'parallel' grid axis can shard across."""
    try:
        kind = jax.devices()[0].device_kind.lower()
    except Exception:
        return 1
    if "v7" in kind:            # v7x: 2 TCs/chip
        return 2
    if "v4" in kind or "v5p" in kind:   # megacore chips
        return 2
    return 1                    # v5e / v6e: single TC


def prepare_rae_params(params, categ_mask):
    """One-time host-side prep (hoisted out of the forward path).

    Returns (prep_arrays_dict, n_categ_cols). Exact fusion of fc2 (no
    activation) into fc3: W23 = W2 @ W3, b23 = b2 @ W3 + b3.
    """
    hi = jax.lax.Precision.HIGHEST
    w23 = jnp.dot(params["w2"], params["w3"], precision=hi)              # (layer, layer)
    b23 = jnp.dot(params["b2"], params["w3"], precision=hi) + params["b3"]
    b_enc = jnp.concatenate([params["b1"], b23], axis=0)                 # (2, layer)
    b_out = jnp.concatenate([params["bout"], categ_mask], axis=0)        # (2, d_out)
    prep = {
        "w1": params["w1"],       # (d_in, layer)
        "b_enc": b_enc,           # (2, layer)   row0 = b1, row1 = b23
        "w23": w23,               # (layer, layer)
        "wout": params["wout"],   # (layer, d_out)
        "b_out": b_out,           # (2, d_out)   row0 = bout, row1 = categ mask
    }
    n_categ = int(np.asarray(jnp.sum(categ_mask)).round())
    return prep, n_categ


@partial(jax.jit, static_argnames=("tb_eff", "n_categ"))
def _rae_pallas_call(x, prep, *, tb_eff, n_categ):
    B, d_in = x.shape
    layer = prep["w1"].shape[1]
    d_out = prep["wout"].shape[1]
    grid = (B // tb_eff,)   # caller guarantees divisibility

    full = lambda shape: pl.BlockSpec(shape, lambda i: (0, 0))

    weight_elems = d_in * layer + layer * layer + layer * d_out + 2 * layer + 2 * d_out
    cost = pl.CostEstimate(
        flops=2 * B * (d_in * layer + layer * layer + layer * d_out),
        transcendentals=B * n_categ,                 # sigmoid on categ cols only
        bytes_accessed=4 * (B * (d_in + d_out) + weight_elems))

    return pl.pallas_call(
        rae_kernel,
        out_shape=jax.ShapeDtypeStruct((B, d_out), jnp.float32),
        grid_spec=pltpu.PrefetchScalarGridSpec(
            num_scalar_prefetch=0,
            grid=grid,
            in_specs=[
                pl.BlockSpec((tb_eff, d_in), lambda i: (i, 0)),  # x
                full((d_in, layer)),                             # w1
                full((2, layer)),                                # packed b1/b23
                full((layer, layer)),                            # w23 (fused fc2@fc3)
                full((layer, d_out)),                            # wout (block-concat)
                full((2, d_out)),                                # packed bout/mask
            ],
            out_specs=pl.BlockSpec((tb_eff, d_out), lambda i: (i, 0)),
        ),
        compiler_params=pltpu.CompilerParams(
            dimension_semantics=("parallel",)),
        cost_estimate=cost,
    )(x, prep["w1"], prep["b_enc"], prep["w23"], prep["wout"], prep["b_out"])


def rae_forward_pallas(x, prep, n_categ):
    """x: (B, D_in) float32.  prep: output of prepare_rae_params."""
    B = x.shape[0]
    cores = _num_parallel_cores()
    if cores > 1 and B >= 16:
        # One batch half per TensorCore; tiles stay sublane-aligned.
        tb = min(B, _round_up(pl.cdiv(B, cores), 8))
        if B % tb != 0:
            tb = B                      # fall back to a single full-extent tile
    else:
        tb = B                          # single grid step on single-TC chips
    return _rae_pallas_call(x, prep, tb_eff=tb, n_categ=n_categ)


def linear_init(key, fan_in, fan_out):
    """Deterministic nn.Linear-style init: U(-1/sqrt(fan_in), 1/sqrt(fan_in))."""
    kw, kb = jax.random.split(key)
    bound = 1.0 / np.sqrt(fan_in)
    w = jax.random.uniform(kw, (fan_in, fan_out), jnp.float32, -bound, bound)
    b = jax.random.uniform(kb, (1, fan_out), jnp.float32, -bound, bound)
    return w, b


def rae_forward_ref(x, params, categ_mask):
    """Unfused pure-JAX reference matching the PyTorch forward exactly."""
    h1 = jnp.maximum(x @ params["w1"] + params["b1"], 0.0)
    z = h1 @ params["w2"] + params["b2"]
    h3 = jnp.maximum(z @ params["w3"] + params["b3"], 0.0)
    o = h3 @ params["wout"] + params["bout"]
    return jnp.where(categ_mask > 0.5, jax.nn.sigmoid(o), o)


if __name__ == "__main__":
    # Synthetic dataset_obj config (mixed categ / real features, dataset_type != image):
    #   feat_info = [(name, col_type, c_size), ...]
    feat_info = [
        ("c1", "categ", 10),
        ("n1", "real", 1),
        ("c2", "categ", 8),
        ("n2", "real", 1),
        ("n3", "real", 1),
        ("n4", "real", 1),
        ("n5", "real", 1),
        ("n6", "real", 1),
    ]
    num_cols = [n for n, t, _ in feat_info if t == "real"]
    size_output = sum(c for _, t, c in feat_info if t == "categ") + len(num_cols)  # 24
    size_input = size_output
    layer_size = 32
    latent_dim = 16
    batch = 512        # small tabular batch

    key = jax.random.PRNGKey(0)
    k_x, k1, k2, k3, k_out = jax.random.split(key, 5)

    # Encoder / decoder trunk params (stored transposed: (in, out)).
    w1, b1 = linear_init(k1, size_input, layer_size)
    w2, b2 = linear_init(k2, layer_size, latent_dim)
    w3, b3 = linear_init(k3, latent_dim, layer_size)

    # Per-feature output linears of the ModuleList, concatenated along the output
    # dim into one block weight matrix + bias (preserves torch.cat(..., 1) order).
    wout_blocks, bout_blocks, mask_blocks = [], [], []
    k_feat = k_out
    for _, col_type, c_size in feat_info:
        out_dim = c_size if col_type == "categ" else 1
        k_feat, k_use = jax.random.split(k_feat)
        w_f, b_f = linear_init(k_use, layer_size, out_dim)
        wout_blocks.append(w_f)
        bout_blocks.append(b_f)
        mask_blocks.append(
            jnp.full((1, out_dim), 1.0 if col_type == "categ" else 0.0, jnp.float32))
    wout = jnp.concatenate(wout_blocks, axis=1)
    bout = jnp.concatenate(bout_blocks, axis=1)
    categ_mask = jnp.concatenate(mask_blocks, axis=1)

    params = {"w1": w1, "b1": b1, "w2": w2, "b2": b2, "w3": w3, "b3": b3,
              "wout": wout, "bout": bout}

    x = jax.random.normal(k_x, (batch, size_input), jnp.float32)

    # One-time prep (fc2/fc3 fusion + operand packing), then the cheap forward.
    prep, n_categ = prepare_rae_params(params, categ_mask)
    prep = jax.tree_util.tree_map(jax.block_until_ready, prep)

    out = rae_forward_pallas(x, prep, n_categ)
    out = jax.block_until_ready(out)

    ref = jax.block_until_ready(rae_forward_ref(x, params, categ_mask))
    assert out.shape == (batch, size_output)
    # Tolerance at 1e-4: the fc2/fc3 fusion changes matmul association
    # (mathematically exact, ~1e-6 level f32 rounding difference).
    np.testing.assert_allclose(np.asarray(out), np.asarray(ref), rtol=1e-4, atol=1e-4)

    print("KERNEL_OK")
</pallas_src>

<mosaic_0001>
module attributes {stable_mosaic.version = 11 : i64} {
  func.func @rae_kernel(%arg0: i32, %arg1: memref<512x24xf32, #tpu.memory_space<vmem>>, %arg2: memref<24x32xf32, #tpu.memory_space<vmem>>, %arg3: memref<2x32xf32, #tpu.memory_space<vmem>>, %arg4: memref<32x32xf32, #tpu.memory_space<vmem>>, %arg5: memref<32x24xf32, #tpu.memory_space<vmem>>, %arg6: memref<2x24xf32, #tpu.memory_space<vmem>>, %arg7: memref<512x24xf32, #tpu.memory_space<vmem>>) attributes {dimension_semantics = [#tpu.dimension_semantics<parallel>], iteration_bounds = array<i64: 1>, scalar_prefetch = 0 : i64, scratch_operands = 0 : i64, tpu.core_type = #tpu.core_type<tc>, window_params = [{transform_indices = @transform_0, window_bounds = array<i64: 512, 24>}, {pipeline_mode = #tpu.pipeline_mode<synchronous>, transform_indices = @transform_1, window_bounds = array<i64: 24, 32>}, {pipeline_mode = #tpu.pipeline_mode<synchronous>, transform_indices = @transform_2, window_bounds = array<i64: 2, 32>}, {pipeline_mode = #tpu.pipeline_mode<synchronous>, transform_indices = @transform_3, window_bounds = array<i64: 32, 32>}, {pipeline_mode = #tpu.pipeline_mode<synchronous>, transform_indices = @transform_4, window_bounds = array<i64: 32, 24>}, {pipeline_mode = #tpu.pipeline_mode<synchronous>, transform_indices = @transform_5, window_bounds = array<i64: 2, 24>}, {transform_indices = @transform_6, window_bounds = array<i64: 512, 24>}]} {
    %c0 = arith.constant 0 : index
    %c0_0 = arith.constant 0 : index
    %0 = vector.load %arg1[%c0, %c0_0] : memref<512x24xf32, #tpu.memory_space<vmem>>, vector<512x24xf32>
    %c0_1 = arith.constant 0 : index
    %c0_2 = arith.constant 0 : index
    %1 = vector.load %arg2[%c0_1, %c0_2] : memref<24x32xf32, #tpu.memory_space<vmem>>, vector<24x32xf32>
    %cst = arith.constant dense<0.000000e+00> : vector<512x32xf32>
    %2 = tpu.matmul %0, %1, %cst {dimension_numbers = #tpu.dot_dimension_numbers<[1], [0], [0], [1], [0, 0, 1, 1], [], []>} : vector<512x24xf32>, vector<24x32xf32>, vector<512x32xf32> -> vector<512x32xf32>
    %c0_3 = arith.constant 0 : index
    %c0_4 = arith.constant 0 : index
    %3 = vector.load %arg3[%c0_3, %c0_4] : memref<2x32xf32, #tpu.memory_space<vmem>>, vector<1x32xf32>
    %4 = vector.broadcast %3 : vector<1x32xf32> to vector<512x32xf32>
    %5 = arith.addf %2, %4 : vector<512x32xf32>
    %cst_5 = arith.constant 0.000000e+00 : f32
    %6 = vector.broadcast %cst_5 : f32 to vector<512x32xf32>
    %7 = arith.maximumf %5, %6 : vector<512x32xf32>
    %c0_6 = arith.constant 0 : index
    %c0_7 = arith.constant 0 : index
    %8 = vector.load %arg4[%c0_6, %c0_7] : memref<32x32xf32, #tpu.memory_space<vmem>>, vector<32x32xf32>
    %cst_8 = arith.constant dense<0.000000e+00> : vector<512x32xf32>
    %9 = tpu.matmul %7, %8, %cst_8 {dimension_numbers = #tpu.dot_dimension_numbers<[1], [0], [0], [1], [0, 0, 1, 1], [], []>} : vector<512x32xf32>, vector<32x32xf32>, vector<512x32xf32> -> vector<512x32xf32>
    %c1 = arith.constant 1 : index
    %c0_9 = arith.constant 0 : index
    %10 = vector.load %arg3[%c1, %c0_9] : memref<2x32xf32, #tpu.memory_space<vmem>>, vector<1x32xf32>
    %11 = vector.broadcast %10 : vector<1x32xf32> to vector<512x32xf32>
    %12 = arith.addf %9, %11 : vector<512x32xf32>
    %cst_10 = arith.constant 0.000000e+00 : f32
    %13 = vector.broadcast %cst_10 : f32 to vector<512x32xf32>
    %14 = arith.maximumf %12, %13 : vector<512x32xf32>
    %c0_11 = arith.constant 0 : index
    %c0_12 = arith.constant 0 : index
    %15 = vector.load %arg5[%c0_11, %c0_12] : memref<32x24xf32, #tpu.memory_space<vmem>>, vector<32x24xf32>
    %cst_13 = arith.constant dense<0.000000e+00> : vector<512x24xf32>
    %16 = tpu.matmul %14, %15, %cst_13 {dimension_numbers = #tpu.dot_dimension_numbers<[1], [0], [0], [1], [0, 0, 1, 1], [], []>} : vector<512x32xf32>, vector<32x24xf32>, vector<512x24xf32> -> vector<512x24xf32>
    %c0_14 = arith.constant 0 : index
    %c0_15 = arith.constant 0 : index
    %17 = vector.load %arg6[%c0_14, %c0_15] : memref<2x24xf32, #tpu.memory_space<vmem>>, vector<1x24xf32>
    %18 = vector.broadcast %17 : vector<1x24xf32> to vector<512x24xf32>
    %19 = arith.addf %16, %18 : vector<512x24xf32>
    %c1_16 = arith.constant 1 : index
    %c0_17 = arith.constant 0 : index
    %20 = vector.load %arg6[%c1_16, %c0_17] : memref<2x24xf32, #tpu.memory_space<vmem>>, vector<1x24xf32>
    %cst_18 = arith.constant 5.000000e-01 : f32
    %21 = vector.broadcast %cst_18 : f32 to vector<1x24xf32>
    %22 = arith.cmpf ogt, %20, %21 : vector<1x24xf32>
    %23 = arith.negf %19 : vector<512x24xf32>
    %24 = math.exp %23 : vector<512x24xf32>
    %cst_19 = arith.constant 1.000000e+00 : f32
    %25 = vector.broadcast %cst_19 : f32 to vector<512x24xf32>
    %26 = arith.addf %25, %24 : vector<512x24xf32>
    %27 = arith.divf %25, %26 : vector<512x24xf32>
    %28 = vector.shape_cast %22 : vector<1x24xi1> to vector<1x24xi1>
    %29 = vector.broadcast %28 : vector<1x24xi1> to vector<512x24xi1>
    %30 = arith.select %29, %27, %19 : vector<512x24xi1>, vector<512x24xf32>
    %c0_20 = arith.constant 0 : index
    %c0_21 = arith.constant 0 : index
    %31 = vector.load %arg7[%c0_20, %c0_21] : memref<512x24xf32, #tpu.memory_space<vmem>>, vector<512x24xf32>
    tpu.vector_store %arg7[%c0_20, %c0_21], %30 {strides = array<i32>} : memref<512x24xf32, #tpu.memory_space<vmem>>, vector<512x24xf32>,
    return
  }
  func.func @transform_0(%arg0: i32) -> (i32, i32) {
    %c0_i32 = arith.constant 0 : i32
    %c0_i32_0 = arith.constant 0 : i32
    return %arg0, %c0_i32 : i32, i32
  }
  func.func @transform_1(%arg0: i32) -> (i32, i32) {
    %c0_i32 = arith.constant 0 : i32
    %c0_i32_0 = arith.constant 0 : i32
    %c0_i32_1 = arith.constant 0 : i32
    return %c0_i32, %c0_i32_0 : i32, i32
  }
  func.func @transform_2(%arg0: i32) -> (i32, i32) {
    %c0_i32 = arith.constant 0 : i32
    %c0_i32_0 = arith.constant 0 : i32
    %c0_i32_1 = arith.constant 0 : i32
    return %c0_i32, %c0_i32_0 : i32, i32
  }
  func.func @transform_3(%arg0: i32) -> (i32, i32) {
    %c0_i32 = arith.constant 0 : i32
    %c0_i32_0 = arith.constant 0 : i32
    %c0_i32_1 = arith.constant 0 : i32
    return %c0_i32, %c0_i32_0 : i32, i32
  }
  func.func @transform_4(%arg0: i32) -> (i32, i32) {
    %c0_i32 = arith.constant 0 : i32
    %c0_i32_0 = arith.constant 0 : i32
    %c0_i32_1 = arith.constant 0 : i32
    return %c0_i32, %c0_i32_0 : i32, i32
  }
  func.func @transform_5(%arg0: i32) -> (i32, i32) {
    %c0_i32 = arith.constant 0 : i32
    %c0_i32_0 = arith.constant 0 : i32
    %c0_i32_1 = arith.constant 0 : i32
    return %c0_i32, %c0_i32_0 : i32, i32
  }
  func.func @transform_6(%arg0: i32) -> (i32, i32) {
    %c0_i32 = arith.constant 0 : i32
    %c0_i32_0 = arith.constant 0 : i32
    return %arg0, %c0_i32 : i32, i32
  }
}

</mosaic_0001>

<llo_original>
// kernel: _rae_pallas_call.1
$region0: #{_rae_pallas_call.1}
  #allocation0 [shape = 'u32[]', space=smem, size = 0x4, offset = 0x4, fixed_abs, tag = 'smem constant byte address 0x4 - core index']
  #allocation1 [shape = 'u32[144,128]{1,0:T(1,128)}', space=vmem, size = 0x12000, scoped, tag = 'internal scratch']
  %s0 = inlined_call_operand.vmem [shape: f32[512,24], index: 0, kind: input, shape index: {}]
  %s1 = inlined_call_operand.vmem [shape: f32[24,32], index: 1, kind: input, shape index: {}]
  %s2 = inlined_call_operand.vmem [shape: f32[2,32], index: 2, kind: input, shape index: {}]
  %s3 = inlined_call_operand.vmem [shape: f32[32,32], index: 3, kind: input, shape index: {}]
  %s4 = inlined_call_operand.vmem [shape: f32[32,24], index: 4, kind: input, shape index: {}]
  %s5 = inlined_call_operand.vmem [shape: f32[2,24], index: 5, kind: input, shape index: {}]
  %s6 = inlined_call_operand.vmem [shape: f32[512,24], index: 6, kind: output, shape index: {}]
  %s7 = sld [smem:[#allocation0]]
  $region34: #{_rae_pallas_call.1} parent=0
    _
  %s9 = ssub.s32 1, %s7
  %s10 = scalar_select 0, %s9, %s7
  // Predicated region
  $region2: #{_rae_pallas_call.1} parent=0 // pred_check
    _
  $region3: #{_rae_pallas_call.1} parent=0 // pred_check_branch
    %12 = sbr.rel (0) target = $region5
  $region4: #{_rae_pallas_call.1} parent=0 // pred_region
    _
  $region5: #{_rae_pallas_call.1} parent=0 // pred_fallthru
    _
  // Predicated region
  $region6: #{_rae_pallas_call.1} parent=0 // pred_check
    _
  $region7: #{_rae_pallas_call.1} parent=0 // pred_check_branch
    %14 = sbr.rel (0) target = $region9
  $region8: #{_rae_pallas_call.1} parent=0 // pred_region
    _
  $region9: #{_rae_pallas_call.1} parent=0 // pred_fallthru
    _
  // Predicated region
  $region10: #{_rae_pallas_call.1} parent=0 // pred_check
    _
  $region11: #{_rae_pallas_call.1} parent=0 // pred_check_branch
    %16 = sbr.rel (0) target = $region13
  $region12: #{_rae_pallas_call.1} parent=0 // pred_region
    _
  $region13: #{_rae_pallas_call.1} parent=0 // pred_fallthru
    _
  // Predicated region
  $region14: #{_rae_pallas_call.1} parent=0 // pred_check
    _
  $region15: #{_rae_pallas_call.1} parent=0 // pred_check_branch
    %18 = sbr.rel (0) target = $region17
  $region16: #{_rae_pallas_call.1} parent=0 // pred_region
    _
  $region17: #{_rae_pallas_call.1} parent=0 // pred_fallthru
    _
  // Predicated region
  $region18: #{_rae_pallas_call.1} parent=0 // pred_check
    _
  $region19: #{_rae_pallas_call.1} parent=0 // pred_check_branch
    %20 = sbr.rel (0) target = $region21
  $region20: #{_rae_pallas_call.1} parent=0 // pred_region
    _
  $region21: #{_rae_pallas_call.1} parent=0 // pred_fallthru
    _
  // Predicated region
  $region22: #{_rae_pallas_call.1} parent=0 // pred_check
    _
  $region23: #{_rae_pallas_call.1} parent=0 // pred_check_branch
    %22 = sbr.rel (0) target = $region25
  $region24: #{_rae_pallas_call.1} parent=0 // pred_region
    _
  $region25: #{_rae_pallas_call.1} parent=0 // pred_fallthru
    _
  %v23 = vld [vmem:[%s0] sm:$0xff]
  %v24 = vld [vmem:[%s0 + $0x8] sm:$0xff]
  %v25 = vld [vmem:[%s0 + $0x10] sm:$0xff]
  %v26 = vld [vmem:[%s0 + $0x18] sm:$0xff]
  %v27 = vld [vmem:[%s0 + $0x20] sm:$0xff]
  %v28 = vld [vmem:[%s0 + $0x28] sm:$0xff]
  %v29 = vld [vmem:[%s0 + $0x30] sm:$0xff]
  %v30 = vld [vmem:[%s0 + $0x38] sm:$0xff]
  %v31 = vld [vmem:[%s0 + $0x40] sm:$0xff]
  %v32 = vld [vmem:[%s0 + $0x48] sm:$0xff]
  %v33 = vld [vmem:[%s0 + $0x50] sm:$0xff]
  %v34 = vld [vmem:[%s0 + $0x58] sm:$0xff]
  %v35 = vld [vmem:[%s0 + $0x60] sm:$0xff]
  %v36 = vld [vmem:[%s0 + $0x68] sm:$0xff]
  %v37 = vld [vmem:[%s0 + $0x70] sm:$0xff]
  %v38 = vld [vmem:[%s0 + $0x78] sm:$0xff]
  %v39 = vld [vmem:[%s0 + $0x80] sm:$0xff]
  %v40 = vld [vmem:[%s0 + $0x88] sm:$0xff]
  %v41 = vld [vmem:[%s0 + $0x90] sm:$0xff]
  %v42 = vld [vmem:[%s0 + $0x98] sm:$0xff]
  %v43 = vld [vmem:[%s0 + $0xa0] sm:$0xff]
  %v44 = vld [vmem:[%s0 + $0xa8] sm:$0xff]
  %v45 = vld [vmem:[%s0 + $0xb0] sm:$0xff]
  %v46 = vld [vmem:[%s0 + $0xb8] sm:$0xff]
  %v47 = vld [vmem:[%s0 + $0xc0] sm:$0xff]
  %v48 = vld [vmem:[%s0 + $0xc8] sm:$0xff]
  %v49 = vld [vmem:[%s0 + $0xd0] sm:$0xff]
  %v50 = vld [vmem:[%s0 + $0xd8] sm:$0xff]
  %v51 = vld [vmem:[%s0 + $0xe0] sm:$0xff]
  %v52 = vld [vmem:[%s0 + $0xe8] sm:$0xff]
  %v53 = vld [vmem:[%s0 + $0xf0] sm:$0xff]
  %v54 = vld [vmem:[%s0 + $0xf8] sm:$0xff]
  %v55 = vld [vmem:[%s0 + $0x100] sm:$0xff]
  %v56 = vld [vmem:[%s0 + $0x108] sm:$0xff]
  %v57 = vld [vmem:[%s0 + $0x110] sm:$0xff]
  %v58 = vld [vmem:[%s0 + $0x118] sm:$0xff]
  %v59 = vld [vmem:[%s0 + $0x120] sm:$0xff]
  %v60 = vld [vmem:[%s0 + $0x128] sm:$0xff]
  %v61 = vld [vmem:[%s0 + $0x130] sm:$0xff]
  %v62 = vld [vmem:[%s0 + $0x138] sm:$0xff]
  %v63 = vld [vmem:[%s0 + $0x140] sm:$0xff]
  %v64 = vld [vmem:[%s0 + $0x148] sm:$0xff]
  %v65 = vld [vmem:[%s0 + $0x150] sm:$0xff]
  %v66 = vld [vmem:[%s0 + $0x158] sm:$0xff]
  %v67 = vld [vmem:[%s0 + $0x160] sm:$0xff]
  %v68 = vld [vmem:[%s0 + $0x168] sm:$0xff]
  %v69 = vld [vmem:[%s0 + $0x170] sm:$0xff]
  %v70 = vld [vmem:[%s0 + $0x178] sm:$0xff]
  %v71 = vld [vmem:[%s0 + $0x180] sm:$0xff]
  %v72 = vld [vmem:[%s0 + $0x188] sm:$0xff]
  %v73 = vld [vmem:[%s0 + $0x190] sm:$0xff]
  %v74 = vld [vmem:[%s0 + $0x198] sm:$0xff]
  %v75 = vld [vmem:[%s0 + $0x1a0] sm:$0xff]
  %v76 = vld [vmem:[%s0 + $0x1a8] sm:$0xff]
  %v77 = vld [vmem:[%s0 + $0x1b0] sm:$0xff]
  %v78 = vld [vmem:[%s0 + $0x1b8] sm:$0xff]
  %v79 = vld [vmem:[%s0 + $0x1c0] sm:$0xff]
  %v80 = vld [vmem:[%s0 + $0x1c8] sm:$0xff]
  %v81 = vld [vmem:[%s0 + $0x1d0] sm:$0xff]
  %v82 = vld [vmem:[%s0 + $0x1d8] sm:$0xff]
  %v83 = vld [vmem:[%s0 + $0x1e0] sm:$0xff]
  %v84 = vld [vmem:[%s0 + $0x1e8] sm:$0xff]
  %v85 = vld [vmem:[%s0 + $0x1f0] sm:$0xff]
  %v86 = vld [vmem:[%s0 + $0x1f8] sm:$0xff]
  %v87 = vld [vmem:[%s1] sm:$0xff]
  %v88 = vld [vmem:[%s1 + $0x8] sm:$0xff]
  %v89 = vld [vmem:[%s1 + $0x10] sm:$0xff]
  %v90 = vld [vmem:[%s2] sm:$0x1]
  %v91 = vlaneseq
  %v92 = vshrl.u32 %v91, 7
  %v93 = vsub.s32 0, %v92
  %v94 = vrot.slane %v90, %v93
  %vm95 = vcmask 195584
  %v97 = vsel %vm95, %v23, 0
  %v100 = vsel %vm95, %v24, 0
  %v103 = vsel %vm95, %v25, 0
  %v106 = vsel %vm95, %v26, 0
  %v109 = vsel %vm95, %v27, 0
  %v112 = vsel %vm95, %v28, 0
  %v115 = vsel %vm95, %v29, 0
  %v118 = vsel %vm95, %v30, 0
  %v121 = vsel %vm95, %v31, 0
  %v124 = vsel %vm95, %v32, 0
  %v127 = vsel %vm95, %v33, 0
  %v130 = vsel %vm95, %v34, 0
  %v133 = vsel %vm95, %v35, 0
  %v136 = vsel %vm95, %v36, 0
  %v139 = vsel %vm95, %v37, 0
  %v142 = vsel %vm95, %v38, 0
  %v145 = vsel %vm95, %v39, 0
  %v148 = vsel %vm95, %v40, 0
  %v151 = vsel %vm95, %v41, 0
  %v154 = vsel %vm95, %v42, 0
  %v157 = vsel %vm95, %v43, 0
  %v160 = vsel %vm95, %v44, 0
  %v163 = vsel %vm95, %v45, 0
  %v166 = vsel %vm95, %v46, 0
  %v169 = vsel %vm95, %v47, 0
  %v172 = vsel %vm95, %v48, 0
  %v175 = vsel %vm95, %v49, 0
  %v178 = vsel %vm95, %v50, 0
  %v181 = vsel %vm95, %v51, 0
  %v184 = vsel %vm95, %v52, 0
  %v187 = vsel %vm95, %v53, 0
  %v190 = vsel %vm95, %v54, 0
  %v193 = vsel %vm95, %v55, 0
  %v196 = vsel %vm95, %v56, 0
  %v199 = vsel %vm95, %v57, 0
  %v202 = vsel %vm95, %v58, 0
  %v205 = vsel %vm95, %v59, 0
  %v208 = vsel %vm95, %v60, 0
  %v211 = vsel %vm95, %v61, 0
  %v214 = vsel %vm95, %v62, 0
  %v217 = vsel %vm95, %v63, 0
  %v220 = vsel %vm95, %v64, 0
  %v223 = vsel %vm95, %v65, 0
  %v226 = vsel %vm95, %v66, 0
  %v229 = vsel %vm95, %v67, 0
  %v232 = vsel %vm95, %v68, 0
  %v235 = vsel %vm95, %v69, 0
  %v238 = vsel %vm95, %v70, 0
  %v241 = vsel %vm95, %v71, 0
  %v244 = vsel %vm95, %v72, 0
  %v247 = vsel %vm95, %v73, 0
  %v250 = vsel %vm95, %v74, 0
  %v253 = vsel %vm95, %v75, 0
  %v256 = vsel %vm95, %v76, 0
  %v259 = vsel %vm95, %v77, 0
  %v262 = vsel %vm95, %v78, 0
  %v265 = vsel %vm95, %v79, 0
  %v268 = vsel %vm95, %v80, 0
  %v271 = vsel %vm95, %v81, 0
  %v274 = vsel %vm95, %v82, 0
  %v277 = vsel %vm95, %v83, 0
  %v280 = vsel %vm95, %v84, 0
  %v283 = vsel %vm95, %v85, 0
  %v286 = vsel %vm95, %v86, 0
  %288 = vmatprep.subr.mxu0 0.0
  %289 = vmatpush1.msra.mxu0 0.0
  %290 = vmatprep.subr.mxu0 0.0
  %291 = vmatpush1.msra.mxu0 0.0
  %292 = vmatprep.subr.mxu0 0.0
  %293 = vmatpush1.msra.mxu0 0.0
  %294 = vmatprep.subr.mxu0 0.0
  %295 = vmatpush1.msra.mxu0 0.0
  %296 = vmatprep.subr.mxu0 0.0
  %297 = vmatpush1.msra.mxu0 0.0
  %298 = vmatprep.subr.mxu0 0.0
  %299 = vmatpush1.msra.mxu0 0.0
  %300 = vmatprep.subr.mxu0 0.0
  %301 = vmatpush1.msra.mxu0 0.0
  %302 = vmatprep.subr.mxu0 0.0
  %303 = vmatpush1.msra.mxu0 0.0
  %304 = vmatprep.subr.mxu0 0.0
  %305 = vmatpush1.msra.mxu0 0.0
  %306 = vmatprep.subr.mxu0 0.0
  %307 = vmatpush1.msra.mxu0 0.0
  %308 = vmatprep.subr.mxu0 0.0
  %309 = vmatpush1.msra.mxu0 0.0
  %310 = vmatprep.subr.mxu0 0.0
  %311 = vmatpush1.msra.mxu0 0.0
  %312 = vmatprep.subr.mxu0 0.0
  %313 = vmatpush1.msra.mxu0 0.0
  %314 = vmatprep.subr.mxu0 0.0
  %315 = vmatpush1.msra.mxu0 %v89
  %316 = vmatprep.subr.mxu0 0.0
  %317 = vmatpush1.msra.mxu0 %v88
  %318 = vmatprep.subr.mxu0 0.0
  %319 = vmatpush1.msra.mxu0 %v87
  %320 = vmatprep.subr.mxu0 0.0
  %321 = vmatpush2.msra.mxu0 0.0
  %322 = vmatprep.subr.mxu0 0.0
  %323 = vmatpush2.msra.mxu0 0.0
  %324 = vmatprep.subr.mxu0 0.0
  %325 = vmatpush2.msra.mxu0 0.0
  %326 = vmatprep.subr.mxu0 0.0
  %327 = vmatpush2.msra.mxu0 0.0
  %328 = vmatprep.subr.mxu0 0.0
  %329 = vmatpush2.msra.mxu0 0.0
  %330 = vmatprep.subr.mxu0 0.0
  %331 = vmatpush2.msra.mxu0 0.0
  %332 = vmatprep.subr.mxu0 0.0
  %333 = vmatpush2.msra.mxu0 0.0
  %334 = vmatprep.subr.mxu0 0.0
  %335 = vmatpush2.msra.mxu0 0.0
  %336 = vmatprep.subr.mxu0 0.0
  %337 = vmatpush2.msra.mxu0 0.0
  %338 = vmatprep.subr.mxu0 0.0
  %339 = vmatpush2.msra.mxu0 0.0
  %340 = vmatprep.subr.mxu0 0.0
  %341 = vmatpush2.msra.mxu0 0.0
  %342 = vmatprep.subr.mxu0 0.0
  %343 = vmatpush2.msra.mxu0 0.0
  %344 = vmatprep.subr.mxu0 0.0
  %345 = vmatpush2.msra.mxu0 0.0
  %346 = vmatprep.subr.mxu0 0.0
  %347 = vmatpush2.msra.mxu0 0.0
  %348 = vmatprep.subr.mxu0 0.0
  %349 = vmatpush2.msra.mxu0 0.0
  %350 = vmatprep.subr.mxu0 0.0
  %351 = vmatpush2.msra.mxu0 0.0
  %352 = vmatprep.mubr.f32.mxu0 0.0
  %353 = vmatmul.mubr.f32.gmra.mxu0 %v97
  %v354 = vpop.f32.mrf.mxu0
  %v355 = vadd.f32 %v94, %v354
  %v356 = vpop.f32.mrf.mxu0
  %357 = vmatprep.mubr.f32.mxu0 0.0
  %358 = vmatmul.mubr.f32.gmra.mxu0 %v100
  %v359 = vpop.f32.mrf.mxu0
  %v360 = vadd.f32 %v94, %v359
  %v361 = vpop.f32.mrf.mxu0
  %362 = vmatprep.mubr.f32.mxu0 0.0
  %363 = vmatmul.mubr.f32.gmra.mxu0 %v103
  %v364 = vpop.f32.mrf.mxu0
  %v365 = vadd.f32 %v94, %v364
  %v366 = vpop.f32.mrf.mxu0
  %367 = vmatprep.mubr.f32.mxu0 0.0
  %368 = vmatmul.mubr.f32.gmra.mxu0 %v106
  %v369 = vpop.f32.mrf.mxu0
  %v370 = vadd.f32 %v94, %v369
  %v371 = vpop.f32.mrf.mxu0
  %372 = vmatprep.mubr.f32.mxu0 0.0
  %373 = vmatmul.mubr.f32.gmra.mxu0 %v109
  %v374 = vpop.f32.mrf.mxu0
  %v375 = vadd.f32 %v94, %v374
  %v376 = vpop.f32.mrf.mxu0
  %377 = vmatprep.mubr.f32.mxu0 0.0
  %378 = vmatmul.mubr.f32.gmra.mxu0 %v112
  %v379 = vpop.f32.mrf.mxu0
  %v380 = vadd.f32 %v94, %v379
  %v381 = vpop.f32.mrf.mxu0
  %382 = vmatprep.mubr.f32.mxu0 0.0
  %383 = vmatmul.mubr.f32.gmra.mxu0 %v115
  %v384 = vpop.f32.mrf.mxu0
  %v385 = vadd.f32 %v94, %v384
  %v386 = vpop.f32.mrf.mxu0
  %387 = vmatprep.mubr.f32.mxu0 0.0
  %388 = vmatmul.mubr.f32.gmra.mxu0 %v118
  %v389 = vpop.f32.mrf.mxu0
  %v390 = vadd.f32 %v94, %v389
  %v391 = vpop.f32.mrf.mxu0
  %392 = vmatprep.mubr.f32.mxu0 0.0
  %393 = vmatmul.mubr.f32.gmra.mxu0 %v121
  %v394 = vpop.f32.mrf.mxu0
  %v395 = vadd.f32 %v94, %v394
  %v396 = vpop.f32.mrf.mxu0
  %397 = vmatprep.mubr.f32.mxu0 0.0
  %398 = vmatmul.mubr.f32.gmra.mxu0 %v124
  %v399 = vpop.f32.mrf.mxu0
  %v400 = vadd.f32 %v94, %v399
  %v401 = vpop.f32.mrf.mxu0
  %402 = vmatprep.mubr.f32.mxu0 0.0
  %403 = vmatmul.mubr.f32.gmra.mxu0 %v127
  %v404 = vpop.f32.mrf.mxu0
  %v405 = vadd.f32 %v94, %v404
  %v406 = vpop.f32.mrf.mxu0
  %407 = vmatprep.mubr.f32.mxu0 0.0
  %408 = vmatmul.mubr.f32.gmra.mxu0 %v130
  %v409 = vpop.f32.mrf.mxu0
  %v410 = vadd.f32 %v94, %v409
  %v411 = vpop.f32.mrf.mxu0
  %412 = vmatprep.mubr.f32.mxu0 0.0
  %413 = vmatmul.mubr.f32.gmra.mxu0 %v133
  %v414 = vpop.f32.mrf.mxu0
  %v415 = vadd.f32 %v94, %v414
  %v416 = vpop.f32.mrf.mxu0
  %417 = vmatprep.mubr.f32.mxu0 0.0
  %418 = vmatmul.mubr.f32.gmra.mxu0 %v136
  %v419 = vpop.f32.mrf.mxu0
  %v420 = vadd.f32 %v94, %v419
  %v421 = vpop.f32.mrf.mxu0
  %422 = vmatprep.mubr.f32.mxu0 0.0
  %423 = vmatmul.mubr.f32.gmra.mxu0 %v139
  %v424 = vpop.f32.mrf.mxu0
  %v425 = vadd.f32 %v94, %v424
  %v426 = vpop.f32.mrf.mxu0
  %427 = vmatprep.mubr.f32.mxu0 0.0
  %428 = vmatmul.mubr.f32.gmra.mxu0 %v142
  %v429 = vpop.f32.mrf.mxu0
  %v430 = vadd.f32 %v94, %v429
  %v431 = vpop.f32.mrf.mxu0
  %432 = vmatprep.mubr.f32.mxu0 0.0
  %433 = vmatmul.mubr.f32.gmra.mxu0 %v145
  %v434 = vpop.f32.mrf.mxu0
  %v435 = vadd.f32 %v94, %v434
  %v436 = vpop.f32.mrf.mxu0
  %437 = vmatprep.mubr.f32.mxu0 0.0
  %438 = vmatmul.mubr.f32.gmra.mxu0 %v148
  %v439 = vpop.f32.mrf.mxu0
  %v440 = vadd.f32 %v94, %v439
  %v441 = vpop.f32.mrf.mxu0
  %442 = vmatprep.mubr.f32.mxu0 0.0
  %443 = vmatmul.mubr.f32.gmra.mxu0 %v151
  %v444 = vpop.f32.mrf.mxu0
  %v445 = vadd.f32 %v94, %v444
  %v446 = vpop.f32.mrf.mxu0
  %447 = vmatprep.mubr.f32.mxu0 0.0
  %448 = vmatmul.mubr.f32.gmra.mxu0 %v154
  %v449 = vpop.f32.mrf.mxu0
  %v450 = vadd.f32 %v94, %v449
  %v451 = vpop.f32.mrf.mxu0
  %452 = vmatprep.mubr.f32.mxu0 0.0
  %453 = vmatmul.mubr.f32.gmra.mxu0 %v157
  %v454 = vpop.f32.mrf.mxu0
  %v455 = vadd.f32 %v94, %v454
  %v456 = vpop.f32.mrf.mxu0
  %457 = vmatprep.mubr.f32.mxu0 0.0
  %458 = vmatmul.mubr.f32.gmra.mxu0 %v160
  %v459 = vpop.f32.mrf.mxu0
  %v460 = vadd.f32 %v94, %v459
  %v461 = vpop.f32.mrf.mxu0
  %462 = vmatprep.mubr.f32.mxu0 0.0
  %463 = vmatmul.mubr.f32.gmra.mxu0 %v163
  %v464 = vpop.f32.mrf.mxu0
  %v465 = vadd.f32 %v94, %v464
  %v466 = vpop.f32.mrf.mxu0
  %467 = vmatprep.mubr.f32.mxu0 0.0
  %468 = vmatmul.mubr.f32.gmra.mxu0 %v166
  %v469 = vpop.f32.mrf.mxu0
  %v470 = vadd.f32 %v94, %v469
  %v471 = vpop.f32.mrf.mxu0
  %472 = vmatprep.mubr.f32.mxu0 0.0
  %473 = vmatmul.mubr.f32.gmra.mxu0 %v169
  %v474 = vpop.f32.mrf.mxu0
  %v475 = vadd.f32 %v94, %v474
  %v476 = vpop.f32.mrf.mxu0
  %477 = vmatprep.mubr.f32.mxu0 0.0
  %478 = vmatmul.mubr.f32.gmra.mxu0 %v172
  %v479 = vpop.f32.mrf.mxu0
  %v480 = vadd.f32 %v94, %v479
  %v481 = vpop.f32.mrf.mxu0
  %482 = vmatprep.mubr.f32.mxu0 0.0
  %483 = vmatmul.mubr.f32.gmra.mxu0 %v175
  %v484 = vpop.f32.mrf.mxu0
  %v485 = vadd.f32 %v94, %v484
  %v486 = vpop.f32.mrf.mxu0
  %487 = vmatprep.mubr.f32.mxu0 0.0
  %488 = vmatmul.mubr.f32.gmra.mxu0 %v178
  %v489 = vpop.f32.mrf.mxu0
  %v490 = vadd.f32 %v94, %v489
  %v491 = vpop.f32.mrf.mxu0
  %492 = vmatprep.mubr.f32.mxu0 0.0
  %493 = vmatmul.mubr.f32.gmra.mxu0 %v181
  %v494 = vpop.f32.mrf.mxu0
  %v495 = vadd.f32 %v94, %v494
  %v496 = vpop.f32.mrf.mxu0
  %497 = vmatprep.mubr.f32.mxu0 0.0
  %498 = vmatmul.mubr.f32.gmra.mxu0 %v184
  %v499 = vpop.f32.mrf.mxu0
  %v500 = vadd.f32 %v94, %v499
  %v501 = vpop.f32.mrf.mxu0
  %502 = vmatprep.mubr.f32.mxu0 0.0
  %503 = vmatmul.mubr.f32.gmra.mxu0 %v187
  %v504 = vpop.f32.mrf.mxu0
  %v505 = vadd.f32 %v94, %v504
  %v506 = vpop.f32.mrf.mxu0
  %507 = vmatprep.mubr.f32.mxu0 0.0
  %508 = vmatmul.mubr.f32.gmra.mxu0 %v190
  %v509 = vpop.f32.mrf.mxu0
  %v510 = vadd.f32 %v94, %v509
  %v511 = vpop.f32.mrf.mxu0
  %512 = vmatprep.mubr.f32.mxu0 0.0
  %513 = vmatmul.mubr.f32.gmra.mxu0 %v193
  %v514 = vpop.f32.mrf.mxu0
  %v515 = vadd.f32 %v94, %v514
  %v516 = vpop.f32.mrf.mxu0
  %517 = vmatprep.mubr.f32.mxu0 0.0
  %518 = vmatmul.mubr.f32.gmra.mxu0 %v196
  %v519 = vpop.f32.mrf.mxu0
  %v520 = vadd.f32 %v94, %v519
  %v521 = vpop.f32.mrf.mxu0
  %522 = vmatprep.mubr.f32.mxu0 0.0
  %523 = vmatmul.mubr.f32.gmra.mxu0 %v199
  %v524 = vpop.f32.mrf.mxu0
  %v525 = vadd.f32 %v94, %v524
  %v526 = vpop.f32.mrf.mxu0
  %527 = vmatprep.mubr.f32.mxu0 0.0
  %528 = vmatmul.mubr.f32.gmra.mxu0 %v202
  %v529 = vpop.f32.mrf.mxu0
  %v530 = vadd.f32 %v94, %v529
  %v531 = vpop.f32.mrf.mxu0
  %532 = vmatprep.mubr.f32.mxu0 0.0
  %533 = vmatmul.mubr.f32.gmra.mxu0 %v205
  %v534 = vpop.f32.mrf.mxu0
  %v535 = vadd.f32 %v94, %v534
  %v536 = vpop.f32.mrf.mxu0
  %537 = vmatprep.mubr.f32.mxu0 0.0
  %538 = vmatmul.mubr.f32.gmra.mxu0 %v208
  %v539 = vpop.f32.mrf.mxu0
  %v540 = vadd.f32 %v94, %v539
  %v541 = vpop.f32.mrf.mxu0
  %542 = vmatprep.mubr.f32.mxu0 0.0
  %543 = vmatmul.mubr.f32.gmra.mxu0 %v211
  %v544 = vpop.f32.mrf.mxu0
  %v545 = vadd.f32 %v94, %v544
  %v546 = vpop.f32.mrf.mxu0
  %547 = vmatprep.mubr.f32.mxu0 0.0
  %548 = vmatmul.mubr.f32.gmra.mxu0 %v214
  %v549 = vpop.f32.mrf.mxu0
  %v550 = vadd.f32 %v94, %v549
  %v551 = vpop.f32.mrf.mxu0
  %552 = vmatprep.mubr.f32.mxu0 0.0
  %553 = vmatmul.mubr.f32.gmra.mxu0 %v217
  %v554 = vpop.f32.mrf.mxu0
  %v555 = vadd.f32 %v94, %v554
  %v556 = vpop.f32.mrf.mxu0
  %557 = vmatprep.mubr.f32.mxu0 0.0
  %558 = vmatmul.mubr.f32.gmra.mxu0 %v220
  %v559 = vpop.f32.mrf.mxu0
  %v560 = vadd.f32 %v94, %v559
  %v561 = vpop.f32.mrf.mxu0
  %562 = vmatprep.mubr.f32.mxu0 0.0
  %563 = vmatmul.mubr.f32.gmra.mxu0 %v223
  %v564 = vpop.f32.mrf.mxu0
  %v565 = vadd.f32 %v94, %v564
  %v566 = vpop.f32.mrf.mxu0
  %567 = vmatprep.mubr.f32.mxu0 0.0
  %568 = vmatmul.mubr.f32.gmra.mxu0 %v226
  %v569 = vpop.f32.mrf.mxu0
  %v570 = vadd.f32 %v94, %v569
  %v571 = vpop.f32.mrf.mxu0
  %572 = vmatprep.mubr.f32.mxu0 0.0
  %573 = vmatmul.mubr.f32.gmra.mxu0 %v229
  %v574 = vpop.f32.mrf.mxu0
  %v575 = vadd.f32 %v94, %v574
  %v576 = vpop.f32.mrf.mxu0
  %577 = vmatprep.mubr.f32.mxu0 0.0
  %578 = vmatmul.mubr.f32.gmra.mxu0 %v232
  %v579 = vpop.f32.mrf.mxu0
  %v580 = vadd.f32 %v94, %v579
  %v581 = vpop.f32.mrf.mxu0
  %582 = vmatprep.mubr.f32.mxu0 0.0
  %583 = vmatmul.mubr.f32.gmra.mxu0 %v235
  %v584 = vpop.f32.mrf.mxu0
  %v585 = vadd.f32 %v94, %v584
  %v586 = vpop.f32.mrf.mxu0
  %587 = vmatprep.mubr.f32.mxu0 0.0
  %588 = vmatmul.mubr.f32.gmra.mxu0 %v238
  %v589 = vpop.f32.mrf.mxu0
  %v590 = vadd.f32 %v94, %v589
  %v591 = vpop.f32.mrf.mxu0
  %592 = vmatprep.mubr.f32.mxu0 0.0
  %593 = vmatmul.mubr.f32.gmra.mxu0 %v241
  %v594 = vpop.f32.mrf.mxu0
  %v595 = vadd.f32 %v94, %v594
  %v596 = vpop.f32.mrf.mxu0
  %597 = vmatprep.mubr.f32.mxu0 0.0
  %598 = vmatmul.mubr.f32.gmra.mxu0 %v244
  %v599 = vpop.f32.mrf.mxu0
  %v600 = vadd.f32 %v94, %v599
  %v601 = vpop.f32.mrf.mxu0
  %602 = vmatprep.mubr.f32.mxu0 0.0
  %603 = vmatmul.mubr.f32.gmra.mxu0 %v247
  %v604 = vpop.f32.mrf.mxu0
  %v605 = vadd.f32 %v94, %v604
  %v606 = vpop.f32.mrf.mxu0
  %607 = vmatprep.mubr.f32.mxu0 0.0
  %608 = vmatmul.mubr.f32.gmra.mxu0 %v250
  %v609 = vpop.f32.mrf.mxu0
  %v610 = vadd.f32 %v94, %v609
  %v611 = vpop.f32.mrf.mxu0
  %612 = vmatprep.mubr.f32.mxu0 0.0
  %613 = vmatmul.mubr.f32.gmra.mxu0 %v253
  %v614 = vpop.f32.mrf.mxu0
  %v615 = vadd.f32 %v94, %v614
  %v616 = vpop.f32.mrf.mxu0
  %617 = vmatprep.mubr.f32.mxu0 0.0
  %618 = vmatmul.mubr.f32.gmra.mxu0 %v256
  %v619 = vpop.f32.mrf.mxu0
  %v620 = vadd.f32 %v94, %v619
  %v621 = vpop.f32.mrf.mxu0
  %622 = vmatprep.mubr.f32.mxu0 0.0
  %623 = vmatmul.mubr.f32.gmra.mxu0 %v259
  %v624 = vpop.f32.mrf.mxu0
  %v625 = vadd.f32 %v94, %v624
  %v626 = vpop.f32.mrf.mxu0
  %627 = vmatprep.mubr.f32.mxu0 0.0
  %628 = vmatmul.mubr.f32.gmra.mxu0 %v262
  %v629 = vpop.f32.mrf.mxu0
  %v630 = vadd.f32 %v94, %v629
  %v631 = vpop.f32.mrf.mxu0
  %632 = vmatprep.mubr.f32.mxu0 0.0
  %633 = vmatmul.mubr.f32.gmra.mxu0 %v265
  %v634 = vpop.f32.mrf.mxu0
  %v635 = vadd.f32 %v94, %v634
  %v636 = vpop.f32.mrf.mxu0
  %637 = vmatprep.mubr.f32.mxu0 0.0
  %638 = vmatmul.mubr.f32.gmra.mxu0 %v268
  %v639 = vpop.f32.mrf.mxu0
  %v640 = vadd.f32 %v94, %v639
  %v641 = vpop.f32.mrf.mxu0
  %642 = vmatprep.mubr.f32.mxu0 0.0
  %643 = vmatmul.mubr.f32.gmra.mxu0 %v271
  %v644 = vpop.f32.mrf.mxu0
  %v645 = vadd.f32 %v94, %v644
  %v646 = vpop.f32.mrf.mxu0
  %647 = vmatprep.mubr.f32.mxu0 0.0
  %648 = vmatmul.mubr.f32.gmra.mxu0 %v274
  %v649 = vpop.f32.mrf.mxu0
  %v650 = vadd.f32 %v94, %v649
  %v651 = vpop.f32.mrf.mxu0
  %652 = vmatprep.mubr.f32.mxu0 0.0
  %653 = vmatmul.mubr.f32.gmra.mxu0 %v277
  %v654 = vpop.f32.mrf.mxu0
  %v655 = vadd.f32 %v94, %v654
  %v656 = vpop.f32.mrf.mxu0
  %657 = vmatprep.mubr.f32.mxu0 0.0
  %658 = vmatmul.mubr.f32.gmra.mxu0 %v280
  %v659 = vpop.f32.mrf.mxu0
  %v660 = vadd.f32 %v94, %v659
  %v661 = vpop.f32.mrf.mxu0
  %662 = vmatprep.mubr.f32.mxu0 0.0
  %663 = vmatmul.mubr.f32.gmra.mxu0 %v283
  %v664 = vpop.f32.mrf.mxu0
  %v665 = vadd.f32 %v94, %v664
  %v666 = vpop.f32.mrf.mxu0
  %667 = vmatprep.mubr.f32.mxu0 0.0
  %668 = vmatmul.mubr.f32.gmra.mxu0 %v286
  %v669 = vpop.f32.mrf.mxu0
  %v670 = vadd.f32 %v94, %v669
  %v671 = vpop.f32.mrf.mxu0
  %672 = vdwg.mxu0
  %v673 = vmax.f32 %v355, 0.0
  %v674 = vmax.f32 %v360, 0.0
  %v675 = vmax.f32 %v365, 0.0
  %v676 = vmax.f32 %v370, 0.0
  %v677 = vmax.f32 %v375, 0.0
  %v678 = vmax.f32 %v380, 0.0
  %v679 = vmax.f32 %v385, 0.0
  %v680 = vmax.f32 %v390, 0.0
  %v681 = vmax.f32 %v395, 0.0
  %v682 = vmax.f32 %v400, 0.0
  %v683 = vmax.f32 %v405, 0.0
  %v684 = vmax.f32 %v410, 0.0
  %v685 = vmax.f32 %v415, 0.0
  %v686 = vmax.f32 %v420, 0.0
  %v687 = vmax.f32 %v425, 0.0
  %v688 = vmax.f32 %v430, 0.0
  %v689 = vmax.f32 %v435, 0.0
  %v690 = vmax.f32 %v440, 0.0
  %v691 = vmax.f32 %v445, 0.0
  %v692 = vmax.f32 %v450, 0.0
  %v693 = vmax.f32 %v455, 0.0
  %v694 = vmax.f32 %v460, 0.0
  %v695 = vmax.f32 %v465, 0.0
  %v696 = vmax.f32 %v470, 0.0
  %v697 = vmax.f32 %v475, 0.0
  %v698 = vmax.f32 %v480, 0.0
  %v699 = vmax.f32 %v485, 0.0
  %v700 = vmax.f32 %v490, 0.0
  %v701 = vmax.f32 %v495, 0.0
  %v702 = vmax.f32 %v500, 0.0
  %v703 = vmax.f32 %v505, 0.0
  %v704 = vmax.f32 %v510, 0.0
  %v705 = vmax.f32 %v515, 0.0
  %v706 = vmax.f32 %v520, 0.0
  %v707 = vmax.f32 %v525, 0.0
  %v708 = vmax.f32 %v530, 0.0
  %v709 = vmax.f32 %v535, 0.0
  %v710 = vmax.f32 %v540, 0.0
  %v711 = vmax.f32 %v545, 0.0
  %v712 = vmax.f32 %v550, 0.0
  %v713 = vmax.f32 %v555, 0.0
  %v714 = vmax.f32 %v560, 0.0
  %v715 = vmax.f32 %v565, 0.0
  %v716 = vmax.f32 %v570, 0.0
  %v717 = vmax.f32 %v575, 0.0
  %v718 = vmax.f32 %v580, 0.0
  %v719 = vmax.f32 %v585, 0.0
  %v720 = vmax.f32 %v590, 0.0
  %v721 = vmax.f32 %v595, 0.0
  %v722 = vmax.f32 %v600, 0.0
  %v723 = vmax.f32 %v605, 0.0
  %v724 = vmax.f32 %v610, 0.0
  %v725 = vmax.f32 %v615, 0.0
  %v726 = vmax.f32 %v620, 0.0
  %v727 = vmax.f32 %v625, 0.0
  %v728 = vmax.f32 %v630, 0.0
  %v729 = vmax.f32 %v635, 0.0
  %v730 = vmax.f32 %v640, 0.0
  %v731 = vmax.f32 %v645, 0.0
  %v732 = vmax.f32 %v650, 0.0
  %v733 = vmax.f32 %v655, 0.0
  %v734 = vmax.f32 %v660, 0.0
  %v735 = vmax.f32 %v665, 0.0
  %v736 = vmax.f32 %v670, 0.0
  %v737 = vld [vmem:[%s3] sm:$0xff]
  %v738 = vld [vmem:[%s3 + $0x8] sm:$0xff]
  %v739 = vld [vmem:[%s3 + $0x10] sm:$0xff]
  %v740 = vld [vmem:[%s3 + $0x18] sm:$0xff]
  %v741 = vld [vmem:[%s2 + $0x1] sm:$0x1]
  %v742 = vlaneseq
  %v743 = vshrl.u32 %v742, 7
  %v744 = vsub.s32 0, %v743
  %v745 = vrot.slane %v741, %v744
  %vm746 = vcmask 261120
  %v748 = vsel %vm746, %v673, 0
  %v751 = vsel %vm746, %v674, 0
  %v754 = vsel %vm746, %v675, 0
  %v757 = vsel %vm746, %v676, 0
  %v760 = vsel %vm746, %v677, 0
  %v763 = vsel %vm746, %v678, 0
  %v766 = vsel %vm746, %v679, 0
  %v769 = vsel %vm746, %v680, 0
  %v772 = vsel %vm746, %v681, 0
  %v775 = vsel %vm746, %v682, 0
  %v778 = vsel %vm746, %v683, 0
  %v781 = vsel %vm746, %v684, 0
  %v784 = vsel %vm746, %v685, 0
  %v787 = vsel %vm746, %v686, 0
  %v790 = vsel %vm746, %v687, 0
  %v793 = vsel %vm746, %v688, 0
  %v796 = vsel %vm746, %v689, 0
  %v799 = vsel %vm746, %v690, 0
  %v802 = vsel %vm746, %v691, 0
  %v805 = vsel %vm746, %v692, 0
  %v808 = vsel %vm746, %v693, 0
  %v811 = vsel %vm746, %v694, 0
  %v814 = vsel %vm746, %v695, 0
  %v817 = vsel %vm746, %v696, 0
  %v820 = vsel %vm746, %v697, 0
  %v823 = vsel %vm746, %v698, 0
  %v826 = vsel %vm746, %v699, 0
  %v829 = vsel %vm746, %v700, 0
  %v832 = vsel %vm746, %v701, 0
  %v835 = vsel %vm746, %v702, 0
  %v838 = vsel %vm746, %v703, 0
  %v841 = vsel %vm746, %v704, 0
  %v844 = vsel %vm746, %v705, 0
  %v847 = vsel %vm746, %v706, 0
  %v850 = vsel %vm746, %v707, 0
  %v853 = vsel %vm746, %v708, 0
  %v856 = vsel %vm746, %v709, 0
  %v859 = vsel %vm746, %v710, 0
  %v862 = vsel %vm746, %v711, 0
  %v865 = vsel %vm746, %v712, 0
  %v868 = vsel %vm746, %v713, 0
  %v871 = vsel %vm746, %v714, 0
  %v874 = vsel %vm746, %v715, 0
  %v877 = vsel %vm746, %v716, 0
  %v880 = vsel %vm746, %v717, 0
  %v883 = vsel %vm746, %v718, 0
  %v886 = vsel %vm746, %v719, 0
  %v889 = vsel %vm746, %v720, 0
  %v892 = vsel %vm746, %v721, 0
  %v895 = vsel %vm746, %v722, 0
  %v898 = vsel %vm746, %v723, 0
  %v901 = vsel %vm746, %v724, 0
  %v904 = vsel %vm746, %v725, 0
  %v907 = vsel %vm746, %v726, 0
  %v910 = vsel %vm746, %v727, 0
  %v913 = vsel %vm746, %v728, 0
  %v916 = vsel %vm746, %v729, 0
  %v919 = vsel %vm746, %v730, 0
  %v922 = vsel %vm746, %v731, 0
  %v925 = vsel %vm746, %v732, 0
  %v928 = vsel %vm746, %v733, 0
  %v931 = vsel %vm746, %v734, 0
  %v934 = vsel %vm746, %v735, 0
  %v937 = vsel %vm746, %v736, 0
  %939 = vmatprep.subr.mxu0 0.0
  %940 = vmatpush1.msra.mxu0 0.0
  %941 = vmatprep.subr.mxu0 0.0
  %942 = vmatpush1.msra.mxu0 0.0
  %943 = vmatprep.subr.mxu0 0.0
  %944 = vmatpush1.msra.mxu0 0.0
  %945 = vmatprep.subr.mxu0 0.0
  %946 = vmatpush1.msra.mxu0 0.0
  %947 = vmatprep.subr.mxu0 0.0
  %948 = vmatpush1.msra.mxu0 0.0
  %949 = vmatprep.subr.mxu0 0.0
  %950 = vmatpush1.msra.mxu0 0.0
  %951 = vmatprep.subr.mxu0 0.0
  %952 = vmatpush1.msra.mxu0 0.0
  %953 = vmatprep.subr.mxu0 0.0
  %954 = vmatpush1.msra.mxu0 0.0
  %955 = vmatprep.subr.mxu0 0.0
  %956 = vmatpush1.msra.mxu0 0.0
  %957 = vmatprep.subr.mxu0 0.0
  %958 = vmatpush1.msra.mxu0 0.0
  %959 = vmatprep.subr.mxu0 0.0
  %960 = vmatpush1.msra.mxu0 0.0
  %961 = vmatprep.subr.mxu0 0.0
  %962 = vmatpush1.msra.mxu0 0.0
  %963 = vmatprep.subr.mxu0 0.0
  %964 = vmatpush1.msra.mxu0 %v740
  %965 = vmatprep.subr.mxu0 0.0
  %966 = vmatpush1.msra.mxu0 %v739
  %967 = vmatprep.subr.mxu0 0.0
  %968 = vmatpush1.msra.mxu0 %v738
  %969 = vmatprep.subr.mxu0 0.0
  %970 = vmatpush1.msra.mxu0 %v737
  %971 = vmatprep.subr.mxu0 0.0
  %972 = vmatpush2.msra.mxu0 0.0
  %973 = vmatprep.subr.mxu0 0.0
  %974 = vmatpush2.msra.mxu0 0.0
  %975 = vmatprep.subr.mxu0 0.0
  %976 = vmatpush2.msra.mxu0 0.0
  %977 = vmatprep.subr.mxu0 0.0
  %978 = vmatpush2.msra.mxu0 0.0
  %979 = vmatprep.subr.mxu0 0.0
  %980 = vmatpush2.msra.mxu0 0.0
  %981 = vmatprep.subr.mxu0 0.0
  %982 = vmatpush2.msra.mxu0 0.0
  %983 = vmatprep.subr.mxu0 0.0
  %984 = vmatpush2.msra.mxu0 0.0
  %985 = vmatprep.subr.mxu0 0.0
  %986 = vmatpush2.msra.mxu0 0.0
  %987 = vmatprep.subr.mxu0 0.0
  %988 = vmatpush2.msra.mxu0 0.0
  %989 = vmatprep.subr.mxu0 0.0
  %990 = vmatpush2.msra.mxu0 0.0
  %991 = vmatprep.subr.mxu0 0.0
  %992 = vmatpush2.msra.mxu0 0.0
  %993 = vmatprep.subr.mxu0 0.0
  %994 = vmatpush2.msra.mxu0 0.0
  %995 = vmatprep.subr.mxu0 0.0
  %996 = vmatpush2.msra.mxu0 0.0
  %997 = vmatprep.subr.mxu0 0.0
  %998 = vmatpush2.msra.mxu0 0.0
  %999 = vmatprep.subr.mxu0 0.0
  %1000 = vmatpush2.msra.mxu0 0.0
  %1001 = vmatprep.subr.mxu0 0.0
  %1002 = vmatpush2.msra.mxu0 0.0
  %1003 = vmatprep.mubr.f32.mxu0 0.0
  %1004 = vmatmul.mubr.f32.gmra.mxu0 %v748
  %v1005 = vpop.f32.mrf.mxu0
  %v1006 = vadd.f32 %v745, %v1005
  %v1007 = vpop.f32.mrf.mxu0
  %1008 = vmatprep.mubr.f32.mxu0 0.0
  %1009 = vmatmul.mubr.f32.gmra.mxu0 %v751
  %v1010 = vpop.f32.mrf.mxu0
  %v1011 = vadd.f32 %v745, %v1010
  %v1012 = vpop.f32.mrf.mxu0
  %1013 = vmatprep.mubr.f32.mxu0 0.0
  %1014 = vmatmul.mubr.f32.gmra.mxu0 %v754
  %v1015 = vpop.f32.mrf.mxu0
  %v1016 = vadd.f32 %v745, %v1015
  %v1017 = vpop.f32.mrf.mxu0
  %1018 = vmatprep.mubr.f32.mxu0 0.0
  %1019 = vmatmul.mubr.f32.gmra.mxu0 %v757
  %v1020 = vpop.f32.mrf.mxu0
  %v1021 = vadd.f32 %v745, %v1020
  %v1022 = vpop.f32.mrf.mxu0
  %1023 = vmatprep.mubr.f32.mxu0 0.0
  %1024 = vmatmul.mubr.f32.gmra.mxu0 %v760
  %v1025 = vpop.f32.mrf.mxu0
  %v1026 = vadd.f32 %v745, %v1025
  %v1027 = vpop.f32.mrf.mxu0
  %1028 = vmatprep.mubr.f32.mxu0 0.0
  %1029 = vmatmul.mubr.f32.gmra.mxu0 %v763
  %v1030 = vpop.f32.mrf.mxu0
  %v1031 = vadd.f32 %v745, %v1030
  %v1032 = vpop.f32.mrf.mxu0
  %1033 = vmatprep.mubr.f32.mxu0 0.0
  %1034 = vmatmul.mubr.f32.gmra.mxu0 %v766
  %v1035 = vpop.f32.mrf.mxu0
  %v1036 = vadd.f32 %v745, %v1035
  %v1037 = vpop.f32.mrf.mxu0
  %1038 = vmatprep.mubr.f32.mxu0 0.0
  %1039 = vmatmul.mubr.f32.gmra.mxu0 %v769
  %v1040 = vpop.f32.mrf.mxu0
  %v1041 = vadd.f32 %v745, %v1040
  %v1042 = vpop.f32.mrf.mxu0
  %1043 = vmatprep.mubr.f32.mxu0 0.0
  %1044 = vmatmul.mubr.f32.gmra.mxu0 %v772
  %v1045 = vpop.f32.mrf.mxu0
  %v1046 = vadd.f32 %v745, %v1045
  %v1047 = vpop.f32.mrf.mxu0
  %1048 = vmatprep.mubr.f32.mxu0 0.0
  %1049 = vmatmul.mubr.f32.gmra.mxu0 %v775
  %v1050 = vpop.f32.mrf.mxu0
  %v1051 = vadd.f32 %v745, %v1050
  %v1052 = vpop.f32.mrf.mxu0
  %1053 = vmatprep.mubr.f32.mxu0 0.0
  %1054 = vmatmul.mubr.f32.gmra.mxu0 %v778
  %v1055 = vpop.f32.mrf.mxu0
  %v1056 = vadd.f32 %v745, %v1055
  %v1057 = vpop.f32.mrf.mxu0
  %1058 = vmatprep.mubr.f32.mxu0 0.0
  %1059 = vmatmul.mubr.f32.gmra.mxu0 %v781
  %v1060 = vpop.f32.mrf.mxu0
  %v1061 = vadd.f32 %v745, %v1060
  %v1062 = vpop.f32.mrf.mxu0
  %1063 = vmatprep.mubr.f32.mxu0 0.0
  %1064 = vmatmul.mubr.f32.gmra.mxu0 %v784
  %v1065 = vpop.f32.mrf.mxu0
  %v1066 = vadd.f32 %v745, %v1065
  %v1067 = vpop.f32.mrf.mxu0
  %1068 = vmatprep.mubr.f32.mxu0 0.0
  %1069 = vmatmul.mubr.f32.gmra.mxu0 %v787
  %v1070 = vpop.f32.mrf.mxu0
  %v1071 = vadd.f32 %v745, %v1070
  %v1072 = vpop.f32.mrf.mxu0
  %1073 = vmatprep.mubr.f32.mxu0 0.0
  %1074 = vmatmul.mubr.f32.gmra.mxu0 %v790
  %v1075 = vpop.f32.mrf.mxu0
  %v1076 = vadd.f32 %v745, %v1075
  %v1077 = vpop.f32.mrf.mxu0
  %1078 = vmatprep.mubr.f32.mxu0 0.0
  %1079 = vmatmul.mubr.f32.gmra.mxu0 %v793
  %v1080 = vpop.f32.mrf.mxu0
  %v1081 = vadd.f32 %v745, %v1080
  %v1082 = vpop.f32.mrf.mxu0
  %1083 = vmatprep.mubr.f32.mxu0 0.0
  %1084 = vmatmul.mubr.f32.gmra.mxu0 %v796
  %v1085 = vpop.f32.mrf.mxu0
  %v1086 = vadd.f32 %v745, %v1085
  %v1087 = vpop.f32.mrf.mxu0
  %1088 = vmatprep.mubr.f32.mxu0 0.0
  %1089 = vmatmul.mubr.f32.gmra.mxu0 %v799
  %v1090 = vpop.f32.mrf.mxu0
  %v1091 = vadd.f32 %v745, %v1090
  %v1092 = vpop.f32.mrf.mxu0
  %1093 = vmatprep.mubr.f32.mxu0 0.0
  %1094 = vmatmul.mubr.f32.gmra.mxu0 %v802
  %v1095 = vpop.f32.mrf.mxu0
  %v1096 = vadd.f32 %v745, %v1095
  %v1097 = vpop.f32.mrf.mxu0
  %1098 = vmatprep.mubr.f32.mxu0 0.0
  %1099 = vmatmul.mubr.f32.gmra.mxu0 %v805
  %v1100 = vpop.f32.mrf.mxu0
  %v1101 = vadd.f32 %v745, %v1100
  %v1102 = vpop.f32.mrf.mxu0
  %1103 = vmatprep.mubr.f32.mxu0 0.0
  %1104 = vmatmul.mubr.f32.gmra.mxu0 %v808
  %v1105 = vpop.f32.mrf.mxu0
  %v1106 = vadd.f32 %v745, %v1105
  %v1107 = vpop.f32.mrf.mxu0
  %1108 = vmatprep.mubr.f32.mxu0 0.0
  %1109 = vmatmul.mubr.f32.gmra.mxu0 %v811
  %v1110 = vpop.f32.mrf.mxu0
  %v1111 = vadd.f32 %v745, %v1110
  %v1112 = vpop.f32.mrf.mxu0
  %1113 = vmatprep.mubr.f32.mxu0 0.0
  %1114 = vmatmul.mubr.f32.gmra.mxu0 %v814
  %v1115 = vpop.f32.mrf.mxu0
  %v1116 = vadd.f32 %v745, %v1115
  %v1117 = vpop.f32.mrf.mxu0
  %1118 = vmatprep.mubr.f32.mxu0 0.0
  %1119 = vmatmul.mubr.f32.gmra.mxu0 %v817
  %v1120 = vpop.f32.mrf.mxu0
  %v1121 = vadd.f32 %v745, %v1120
  %v1122 = vpop.f32.mrf.mxu0
  %1123 = vmatprep.mubr.f32.mxu0 0.0
  %1124 = vmatmul.mubr.f32.gmra.mxu0 %v820
  %v1125 = vpop.f32.mrf.mxu0
  %v1126 = vadd.f32 %v745, %v1125
  %v1127 = vpop.f32.mrf.mxu0
  %1128 = vmatprep.mubr.f32.mxu0 0.0
  %1129 = vmatmul.mubr.f32.gmra.mxu0 %v823
  %v1130 = vpop.f32.mrf.mxu0
  %v1131 = vadd.f32 %v745, %v1130
  %v1132 = vpop.f32.mrf.mxu0
  %1133 = vmatprep.mubr.f32.mxu0 0.0
  %1134 = vmatmul.mubr.f32.gmra.mxu0 %v826
  %v1135 = vpop.f32.mrf.mxu0
  %v1136 = vadd.f32 %v745, %v1135
  %v1137 = vpop.f32.mrf.mxu0
  %1138 = vmatprep.mubr.f32.mxu0 0.0
  %1139 = vmatmul.mubr.f32.gmra.mxu0 %v829
  %v1140 = vpop.f32.mrf.mxu0
  %v1141 = vadd.f32 %v745, %v1140
  %v1142 = vpop.f32.mrf.mxu0
  %1143 = vmatprep.mubr.f32.mxu0 0.0
  %1144 = vmatmul.mubr.f32.gmra.mxu0 %v832
  %v1145 = vpop.f32.mrf.mxu0
  %v1146 = vadd.f32 %v745, %v1145
  %v1147 = vpop.f32.mrf.mxu0
  %1148 = vmatprep.mubr.f32.mxu0 0.0
  %1149 = vmatmul.mubr.f32.gmra.mxu0 %v835
  %v1150 = vpop.f32.mrf.mxu0
  %v1151 = vadd.f32 %v745, %v1150
  %v1152 = vpop.f32.mrf.mxu0
  %1153 = vmatprep.mubr.f32.mxu0 0.0
  %1154 = vmatmul.mubr.f32.gmra.mxu0 %v838
  %v1155 = vpop.f32.mrf.mxu0
  %v1156 = vadd.f32 %v745, %v1155
  %v1157 = vpop.f32.mrf.mxu0
  %1158 = vmatprep.mubr.f32.mxu0 0.0
  %1159 = vmatmul.mubr.f32.gmra.mxu0 %v841
  %v1160 = vpop.f32.mrf.mxu0
  %v1161 = vadd.f32 %v745, %v1160
  %v1162 = vpop.f32.mrf.mxu0
  %1163 = vmatprep.mubr.f32.mxu0 0.0
  %1164 = vmatmul.mubr.f32.gmra.mxu0 %v844
  %v1165 = vpop.f32.mrf.mxu0
  %v1166 = vadd.f32 %v745, %v1165
  %v1167 = vpop.f32.mrf.mxu0
  %1168 = vmatprep.mubr.f32.mxu0 0.0
  %1169 = vmatmul.mubr.f32.gmra.mxu0 %v847
  %v1170 = vpop.f32.mrf.mxu0
  %v1171 = vadd.f32 %v745, %v1170
  %v1172 = vpop.f32.mrf.mxu0
  %1173 = vmatprep.mubr.f32.mxu0 0.0
  %1174 = vmatmul.mubr.f32.gmra.mxu0 %v850
  %v1175 = vpop.f32.mrf.mxu0
  %v1176 = vadd.f32 %v745, %v1175
  %v1177 = vpop.f32.mrf.mxu0
  %1178 = vmatprep.mubr.f32.mxu0 0.0
  %1179 = vmatmul.mubr.f32.gmra.mxu0 %v853
  %v1180 = vpop.f32.mrf.mxu0
  %v1181 = vadd.f32 %v745, %v1180
  %v1182 = vpop.f32.mrf.mxu0
  %1183 = vmatprep.mubr.f32.mxu0 0.0
  %1184 = vmatmul.mubr.f32.gmra.mxu0 %v856
  %v1185 = vpop.f32.mrf.mxu0
  %v1186 = vadd.f32 %v745, %v1185
  %v1187 = vpop.f32.mrf.mxu0
  %1188 = vmatprep.mubr.f32.mxu0 0.0
  %1189 = vmatmul.mubr.f32.gmra.mxu0 %v859
  %v1190 = vpop.f32.mrf.mxu0
  %v1191 = vadd.f32 %v745, %v1190
  %v1192 = vpop.f32.mrf.mxu0
  %1193 = vmatprep.mubr.f32.mxu0 0.0
  %1194 = vmatmul.mubr.f32.gmra.mxu0 %v862
  %v1195 = vpop.f32.mrf.mxu0
  %v1196 = vadd.f32 %v745, %v1195
  %v1197 = vpop.f32.mrf.mxu0
  %1198 = vmatprep.mubr.f32.mxu0 0.0
  %1199 = vmatmul.mubr.f32.gmra.mxu0 %v865
  %v1200 = vpop.f32.mrf.mxu0
  %v1201 = vadd.f32 %v745, %v1200
  %v1202 = vpop.f32.mrf.mxu0
  %1203 = vmatprep.mubr.f32.mxu0 0.0
  %1204 = vmatmul.mubr.f32.gmra.mxu0 %v868
  %v1205 = vpop.f32.mrf.mxu0
  %v1206 = vadd.f32 %v745, %v1205
  %v1207 = vpop.f32.mrf.mxu0
  %1208 = vmatprep.mubr.f32.mxu0 0.0
  %1209 = vmatmul.mubr.f32.gmra.mxu0 %v871
  %v1210 = vpop.f32.mrf.mxu0
  %v1211 = vadd.f32 %v745, %v1210
  %v1212 = vpop.f32.mrf.mxu0
  %1213 = vmatprep.mubr.f32.mxu0 0.0
  %1214 = vmatmul.mubr.f32.gmra.mxu0 %v874
  %v1215 = vpop.f32.mrf.mxu0
  %v1216 = vadd.f32 %v745, %v1215
  %v1217 = vpop.f32.mrf.mxu0
  %1218 = vmatprep.mubr.f32.mxu0 0.0
  %1219 = vmatmul.mubr.f32.gmra.mxu0 %v877
  %v1220 = vpop.f32.mrf.mxu0
  %v1221 = vadd.f32 %v745, %v1220
  %v1222 = vpop.f32.mrf.mxu0
  %1223 = vmatprep.mubr.f32.mxu0 0.0
  %1224 = vmatmul.mubr.f32.gmra.mxu0 %v880
  %v1225 = vpop.f32.mrf.mxu0
  %v1226 = vadd.f32 %v745, %v1225
  %v1227 = vpop.f32.mrf.mxu0
  %1228 = vmatprep.mubr.f32.mxu0 0.0
  %1229 = vmatmul.mubr.f32.gmra.mxu0 %v883
  %v1230 = vpop.f32.mrf.mxu0
  %v1231 = vadd.f32 %v745, %v1230
  %v1232 = vpop.f32.mrf.mxu0
  %1233 = vmatprep.mubr.f32.mxu0 0.0
  %1234 = vmatmul.mubr.f32.gmra.mxu0 %v886
  %v1235 = vpop.f32.mrf.mxu0
  %v1236 = vadd.f32 %v745, %v1235
  %v1237 = vpop.f32.mrf.mxu0
  %1238 = vmatprep.mubr.f32.mxu0 0.0
  %1239 = vmatmul.mubr.f32.gmra.mxu0 %v889
  %v1240 = vpop.f32.mrf.mxu0
  %v1241 = vadd.f32 %v745, %v1240
  %v1242 = vpop.f32.mrf.mxu0
  %1243 = vmatprep.mubr.f32.mxu0 0.0
  %1244 = vmatmul.mubr.f32.gmra.mxu0 %v892
  %v1245 = vpop.f32.mrf.mxu0
  %v1246 = vadd.f32 %v745, %v1245
  %v1247 = vpop.f32.mrf.mxu0
  %1248 = vmatprep.mubr.f32.mxu0 0.0
  %1249 = vmatmul.mubr.f32.gmra.mxu0 %v895
  %v1250 = vpop.f32.mrf.mxu0
  %v1251 = vadd.f32 %v745, %v1250
  %v1252 = vpop.f32.mrf.mxu0
  %1253 = vmatprep.mubr.f32.mxu0 0.0
  %1254 = vmatmul.mubr.f32.gmra.mxu0 %v898
  %v1255 = vpop.f32.mrf.mxu0
  %v1256 = vadd.f32 %v745, %v1255
  %v1257 = vpop.f32.mrf.mxu0
  %1258 = vmatprep.mubr.f32.mxu0 0.0
  %1259 = vmatmul.mubr.f32.gmra.mxu0 %v901
  %v1260 = vpop.f32.mrf.mxu0
  %v1261 = vadd.f32 %v745, %v1260
  %v1262 = vpop.f32.mrf.mxu0
  %1263 = vmatprep.mubr.f32.mxu0 0.0
  %1264 = vmatmul.mubr.f32.gmra.mxu0 %v904
  %v1265 = vpop.f32.mrf.mxu0
  %v1266 = vadd.f32 %v745, %v1265
  %v1267 = vpop.f32.mrf.mxu0
  %1268 = vmatprep.mubr.f32.mxu0 0.0
  %1269 = vmatmul.mubr.f32.gmra.mxu0 %v907
  %v1270 = vpop.f32.mrf.mxu0
  %v1271 = vadd.f32 %v745, %v1270
  %v1272 = vpop.f32.mrf.mxu0
  %1273 = vmatprep.mubr.f32.mxu0 0.0
  %1274 = vmatmul.mubr.f32.gmra.mxu0 %v910
  %v1275 = vpop.f32.mrf.mxu0
  %v1276 = vadd.f32 %v745, %v1275
  %v1277 = vpop.f32.mrf.mxu0
  %1278 = vmatprep.mubr.f32.mxu0 0.0
  %1279 = vmatmul.mubr.f32.gmra.mxu0 %v913
  %v1280 = vpop.f32.mrf.mxu0
  %v1281 = vadd.f32 %v745, %v1280
  %v1282 = vpop.f32.mrf.mxu0
  %1283 = vmatprep.mubr.f32.mxu0 0.0
  %1284 = vmatmul.mubr.f32.gmra.mxu0 %v916
  %v1285 = vpop.f32.mrf.mxu0
  %v1286 = vadd.f32 %v745, %v1285
  %v1287 = vpop.f32.mrf.mxu0
  %1288 = vmatprep.mubr.f32.mxu0 0.0
  %1289 = vmatmul.mubr.f32.gmra.mxu0 %v919
  %v1290 = vpop.f32.mrf.mxu0
  %v1291 = vadd.f32 %v745, %v1290
  %v1292 = vpop.f32.mrf.mxu0
  %1293 = vmatprep.mubr.f32.mxu0 0.0
  %1294 = vmatmul.mubr.f32.gmra.mxu0 %v922
  %v1295 = vpop.f32.mrf.mxu0
  %v1296 = vadd.f32 %v745, %v1295
  %v1297 = vpop.f32.mrf.mxu0
  %1298 = vmatprep.mubr.f32.mxu0 0.0
  %1299 = vmatmul.mubr.f32.gmra.mxu0 %v925
  %v1300 = vpop.f32.mrf.mxu0
  %v1301 = vadd.f32 %v745, %v1300
  %v1302 = vpop.f32.mrf.mxu0
  %1303 = vmatprep.mubr.f32.mxu0 0.0
  %1304 = vmatmul.mubr.f32.gmra.mxu0 %v928
  %v1305 = vpop.f32.mrf.mxu0
  %v1306 = vadd.f32 %v745, %v1305
  %v1307 = vpop.f32.mrf.mxu0
  %1308 = vmatprep.mubr.f32.mxu0 0.0
  %1309 = vmatmul.mubr.f32.gmra.mxu0 %v931
  %v1310 = vpop.f32.mrf.mxu0
  %v1311 = vadd.f32 %v745, %v1310
  %v1312 = vpop.f32.mrf.mxu0
  %1313 = vmatprep.mubr.f32.mxu0 0.0
  %1314 = vmatmul.mubr.f32.gmra.mxu0 %v934
  %v1315 = vpop.f32.mrf.mxu0
  %v1316 = vadd.f32 %v745, %v1315
  %v1317 = vpop.f32.mrf.mxu0
  %1318 = vmatprep.mubr.f32.mxu0 0.0
  %1319 = vmatmul.mubr.f32.gmra.mxu0 %v937
  %v1320 = vpop.f32.mrf.mxu0
  %v1321 = vadd.f32 %v745, %v1320
  %v1322 = vpop.f32.mrf.mxu0
  %1323 = vdwg.mxu0
  %v1324 = vmax.f32 %v1006, 0.0
  %v1325 = vmax.f32 %v1011, 0.0
  %v1326 = vmax.f32 %v1016, 0.0
  %v1327 = vmax.f32 %v1021, 0.0
  %v1328 = vmax.f32 %v1026, 0.0
  %v1329 = vmax.f32 %v1031, 0.0
  %v1330 = vmax.f32 %v1036, 0.0
  %v1331 = vmax.f32 %v1041, 0.0
  %v1332 = vmax.f32 %v1046, 0.0
  %v1333 = vmax.f32 %v1051, 0.0
  %v1334 = vmax.f32 %v1056, 0.0
  %v1335 = vmax.f32 %v1061, 0.0
  %v1336 = vmax.f32 %v1066, 0.0
  %v1337 = vmax.f32 %v1071, 0.0
  %v1338 = vmax.f32 %v1076, 0.0
  %v1339 = vmax.f32 %v1081, 0.0
  %v1340 = vmax.f32 %v1086, 0.0
  %v1341 = vmax.f32 %v1091, 0.0
  %v1342 = vmax.f32 %v1096, 0.0
  %v1343 = vmax.f32 %v1101, 0.0
  %v1344 = vmax.f32 %v1106, 0.0
  %v1345 = vmax.f32 %v1111, 0.0
  %v1346 = vmax.f32 %v1116, 0.0
  %v1347 = vmax.f32 %v1121, 0.0
  %v1348 = vmax.f32 %v1126, 0.0
  %v1349 = vmax.f32 %v1131, 0.0
  %v1350 = vmax.f32 %v1136, 0.0
  %v1351 = vmax.f32 %v1141, 0.0
  %v1352 = vmax.f32 %v1146, 0.0
  %v1353 = vmax.f32 %v1151, 0.0
  %v1354 = vmax.f32 %v1156, 0.0
  %v1355 = vmax.f32 %v1161, 0.0
  %v1356 = vmax.f32 %v1166, 0.0
  %v1357 = vmax.f32 %v1171, 0.0
  %v1358 = vmax.f32 %v1176, 0.0
  %v1359 = vmax.f32 %v1181, 0.0
  %v1360 = vmax.f32 %v1186, 0.0
  %v1361 = vmax.f32 %v1191, 0.0
  %v1362 = vmax.f32 %v1196, 0.0
  %v1363 = vmax.f32 %v1201, 0.0
  %v1364 = vmax.f32 %v1206, 0.0
  %v1365 = vmax.f32 %v1211, 0.0
  %v1366 = vmax.f32 %v1216, 0.0
  %v1367 = vmax.f32 %v1221, 0.0
  %v1368 = vmax.f32 %v1226, 0.0
  %v1369 = vmax.f32 %v1231, 0.0
  %v1370 = vmax.f32 %v1236, 0.0
  %v1371 = vmax.f32 %v1241, 0.0
  %v1372 = vmax.f32 %v1246, 0.0
  %v1373 = vmax.f32 %v1251, 0.0
  %v1374 = vmax.f32 %v1256, 0.0
  %v1375 = vmax.f32 %v1261, 0.0
  %v1376 = vmax.f32 %v1266, 0.0
  %v1377 = vmax.f32 %v1271, 0.0
  %v1378 = vmax.f32 %v1276, 0.0
  %v1379 = vmax.f32 %v1281, 0.0
  %v1380 = vmax.f32 %v1286, 0.0
  %v1381 = vmax.f32 %v1291, 0.0
  %v1382 = vmax.f32 %v1296, 0.0
  %v1383 = vmax.f32 %v1301, 0.0
  %v1384 = vmax.f32 %v1306, 0.0
  %v1385 = vmax.f32 %v1311, 0.0
  %v1386 = vmax.f32 %v1316, 0.0
  %v1387 = vmax.f32 %v1321, 0.0
  %v1388 = vld [vmem:[%s4] sm:$0xff]
  %v1389 = vld [vmem:[%s4 + $0x8] sm:$0xff]
  %v1390 = vld [vmem:[%s4 + $0x10] sm:$0xff]
  %v1391 = vld [vmem:[%s4 + $0x18] sm:$0xff]
  %v1392 = vld [vmem:[%s5] sm:$0x1]
  %v1393 = vlaneseq
  %v1394 = vshrl.u32 %v1393, 7
  %v1395 = vsub.s32 0, %v1394
  %v1396 = vrot.slane %v1392, %v1395
  %v1398 = vsel %vm746, %v1324, 0
  %v1401 = vsel %vm746, %v1325, 0
  %v1404 = vsel %vm746, %v1326, 0
  %v1407 = vsel %vm746, %v1327, 0
  %v1410 = vsel %vm746, %v1328, 0
  %v1413 = vsel %vm746, %v1329, 0
  %v1416 = vsel %vm746, %v1330, 0
  %v1419 = vsel %vm746, %v1331, 0
  %v1422 = vsel %vm746, %v1332, 0
  %v1425 = vsel %vm746, %v1333, 0
  %v1428 = vsel %vm746, %v1334, 0
  %v1431 = vsel %vm746, %v1335, 0
  %v1434 = vsel %vm746, %v1336, 0
  %v1437 = vsel %vm746, %v1337, 0
  %v1440 = vsel %vm746, %v1338, 0
  %v1443 = vsel %vm746, %v1339, 0
  %v1446 = vsel %vm746, %v1340, 0
  %v1449 = vsel %vm746, %v1341, 0
  %v1452 = vsel %vm746, %v1342, 0
  %v1455 = vsel %vm746, %v1343, 0
  %v1458 = vsel %vm746, %v1344, 0
  %v1461 = vsel %vm746, %v1345, 0
  %v1464 = vsel %vm746, %v1346, 0
  %v1467 = vsel %vm746, %v1347, 0
  %v1470 = vsel %vm746, %v1348, 0
  %v1473 = vsel %vm746, %v1349, 0
  %v1476 = vsel %vm746, %v1350, 0
  %v1479 = vsel %vm746, %v1351, 0
  %v1482 = vsel %vm746, %v1352, 0
  %v1485 = vsel %vm746, %v1353, 0
  %v1488 = vsel %vm746, %v1354, 0
  %v1491 = vsel %vm746, %v1355, 0
  %v1494 = vsel %vm746, %v1356, 0
  %v1497 = vsel %vm746, %v1357, 0
  %v1500 = vsel %vm746, %v1358, 0
  %v1503 = vsel %vm746, %v1359, 0
  %v1506 = vsel %vm746, %v1360, 0
  %v1509 = vsel %vm746, %v1361, 0
  %v1512 = vsel %vm746, %v1362, 0
  %v1515 = vsel %vm746, %v1363, 0
  %v1518 = vsel %vm746, %v1364, 0
  %v1521 = vsel %vm746, %v1365, 0
  %v1524 = vsel %vm746, %v1366, 0
  %v1527 = vsel %vm746, %v1367, 0
  %v1530 = vsel %vm746, %v1368, 0
  %v1533 = vsel %vm746, %v1369, 0
  %v1536 = vsel %vm746, %v1370, 0
  %v1539 = vsel %vm746, %v1371, 0
  %v1542 = vsel %vm746, %v1372, 0
  %v1545 = vsel %vm746, %v1373, 0
  %v1548 = vsel %vm746, %v1374, 0
  %v1551 = vsel %vm746, %v1375, 0
  %v1554 = vsel %vm746, %v1376, 0
  %v1557 = vsel %vm746, %v1377, 0
  %v1560 = vsel %vm746, %v1378, 0
  %v1563 = vsel %vm746, %v1379, 0
  %v1566 = vsel %vm746, %v1380, 0
  %v1569 = vsel %vm746, %v1381, 0
  %v1572 = vsel %vm746, %v1382, 0
  %v1575 = vsel %vm746, %v1383, 0
  %v1578 = vsel %vm746, %v1384, 0
  %v1581 = vsel %vm746, %v1385, 0
  %v1584 = vsel %vm746, %v1386, 0
  %v1587 = vsel %vm746, %v1387, 0
  %1589 = vmatprep.subr.mxu0 0.0
  %1590 = vmatpush1.msra.mxu0 0.0
  %1591 = vmatprep.subr.mxu0 0.0
  %1592 = vmatpush1.msra.mxu0 0.0
  %1593 = vmatprep.subr.mxu0 0.0
  %1594 = vmatpush1.msra.mxu0 0.0
  %1595 = vmatprep.subr.mxu0 0.0
  %1596 = vmatpush1.msra.mxu0 0.0
  %1597 = vmatprep.subr.mxu0 0.0
  %1598 = vmatpush1.msra.mxu0 0.0
  %1599 = vmatprep.subr.mxu0 0.0
  %1600 = vmatpush1.msra.mxu0 0.0
  %1601 = vmatprep.subr.mxu0 0.0
  %1602 = vmatpush1.msra.mxu0 0.0
  %1603 = vmatprep.subr.mxu0 0.0
  %1604 = vmatpush1.msra.mxu0 0.0
  %1605 = vmatprep.subr.mxu0 0.0
  %1606 = vmatpush1.msra.mxu0 0.0
  %1607 = vmatprep.subr.mxu0 0.0
  %1608 = vmatpush1.msra.mxu0 0.0
  %1609 = vmatprep.subr.mxu0 0.0
  %1610 = vmatpush1.msra.mxu0 0.0
  %1611 = vmatprep.subr.mxu0 0.0
  %1612 = vmatpush1.msra.mxu0 0.0
  %1613 = vmatprep.subr.mxu0 0.0
  %1614 = vmatpush1.msra.mxu0 %v1391
  %1615 = vmatprep.subr.mxu0 0.0
  %1616 = vmatpush1.msra.mxu0 %v1390
  %1617 = vmatprep.subr.mxu0 0.0
  %1618 = vmatpush1.msra.mxu0 %v1389
  %1619 = vmatprep.subr.mxu0 0.0
  %1620 = vmatpush1.msra.mxu0 %v1388
  %1621 = vmatprep.subr.mxu0 0.0
  %1622 = vmatpush2.msra.mxu0 0.0
  %1623 = vmatprep.subr.mxu0 0.0
  %1624 = vmatpush2.msra.mxu0 0.0
  %1625 = vmatprep.subr.mxu0 0.0
  %1626 = vmatpush2.msra.mxu0 0.0
  %1627 = vmatprep.subr.mxu0 0.0
  %1628 = vmatpush2.msra.mxu0 0.0
  %1629 = vmatprep.subr.mxu0 0.0
  %1630 = vmatpush2.msra.mxu0 0.0
  %1631 = vmatprep.subr.mxu0 0.0
  %1632 = vmatpush2.msra.mxu0 0.0
  %1633 = vmatprep.subr.mxu0 0.0
  %1634 = vmatpush2.msra.mxu0 0.0
  %1635 = vmatprep.subr.mxu0 0.0
  %1636 = vmatpush2.msra.mxu0 0.0
  %1637 = vmatprep.subr.mxu0 0.0
  %1638 = vmatpush2.msra.mxu0 0.0
  %1639 = vmatprep.subr.mxu0 0.0
  %1640 = vmatpush2.msra.mxu0 0.0
  %1641 = vmatprep.subr.mxu0 0.0
  %1642 = vmatpush2.msra.mxu0 0.0
  %1643 = vmatprep.subr.mxu0 0.0
  %1644 = vmatpush2.msra.mxu0 0.0
  %1645 = vmatprep.subr.mxu0 0.0
  %1646 = vmatpush2.msra.mxu0 0.0
  %1647 = vmatprep.subr.mxu0 0.0
  %1648 = vmatpush2.msra.mxu0 0.0
  %1649 = vmatprep.subr.mxu0 0.0
  %1650 = vmatpush2.msra.mxu0 0.0
  %1651 = vmatprep.subr.mxu0 0.0
  %1652 = vmatpush2.msra.mxu0 0.0
  %1653 = vmatprep.mubr.f32.mxu0 0.0
  %1654 = vmatmul.mubr.f32.gmra.mxu0 %v1398
  %v1655 = vpop.f32.mrf.mxu0
  %v1656 = vadd.f32 %v1396, %v1655
  %v1657 = vpop.f32.mrf.mxu0
  %1658 = vmatprep.mubr.f32.mxu0 0.0
  %1659 = vmatmul.mubr.f32.gmra.mxu0 %v1401
  %v1660 = vpop.f32.mrf.mxu0
  %v1661 = vadd.f32 %v1396, %v1660
  %v1662 = vpop.f32.mrf.mxu0
  %1663 = vmatprep.mubr.f32.mxu0 0.0
  %1664 = vmatmul.mubr.f32.gmra.mxu0 %v1404
  %v1665 = vpop.f32.mrf.mxu0
  %v1666 = vadd.f32 %v1396, %v1665
  %v1667 = vpop.f32.mrf.mxu0
  %1668 = vmatprep.mubr.f32.mxu0 0.0
  %1669 = vmatmul.mubr.f32.gmra.mxu0 %v1407
  %v1670 = vpop.f32.mrf.mxu0
  %v1671 = vadd.f32 %v1396, %v1670
  %v1672 = vpop.f32.mrf.mxu0
  %1673 = vmatprep.mubr.f32.mxu0 0.0
  %1674 = vmatmul.mubr.f32.gmra.mxu0 %v1410
  %v1675 = vpop.f32.mrf.mxu0
  %v1676 = vadd.f32 %v1396, %v1675
  %v1677 = vpop.f32.mrf.mxu0
  %1678 = vmatprep.mubr.f32.mxu0 0.0
  %1679 = vmatmul.mubr.f32.gmra.mxu0 %v1413
  %v1680 = vpop.f32.mrf.mxu0
  %v1681 = vadd.f32 %v1396, %v1680
  %v1682 = vpop.f32.mrf.mxu0
  %1683 = vmatprep.mubr.f32.mxu0 0.0
  %1684 = vmatmul.mubr.f32.gmra.mxu0 %v1416
  %v1685 = vpop.f32.mrf.mxu0
  %v1686 = vadd.f32 %v1396, %v1685
  %v1687 = vpop.f32.mrf.mxu0
  %1688 = vmatprep.mubr.f32.mxu0 0.0
  %1689 = vmatmul.mubr.f32.gmra.mxu0 %v1419
  %v1690 = vpop.f32.mrf.mxu0
  %v1691 = vadd.f32 %v1396, %v1690
  %v1692 = vpop.f32.mrf.mxu0
  %1693 = vmatprep.mubr.f32.mxu0 0.0
  %1694 = vmatmul.mubr.f32.gmra.mxu0 %v1422
  %v1695 = vpop.f32.mrf.mxu0
  %v1696 = vadd.f32 %v1396, %v1695
  %v1697 = vpop.f32.mrf.mxu0
  %1698 = vmatprep.mubr.f32.mxu0 0.0
  %1699 = vmatmul.mubr.f32.gmra.mxu0 %v1425
  %v1700 = vpop.f32.mrf.mxu0
  %v1701 = vadd.f32 %v1396, %v1700
  %v1702 = vpop.f32.mrf.mxu0
  %1703 = vmatprep.mubr.f32.mxu0 0.0
  %1704 = vmatmul.mubr.f32.gmra.mxu0 %v1428
  %v1705 = vpop.f32.mrf.mxu0
  %v1706 = vadd.f32 %v1396, %v1705
  %v1707 = vpop.f32.mrf.mxu0
  %1708 = vmatprep.mubr.f32.mxu0 0.0
  %1709 = vmatmul.mubr.f32.gmra.mxu0 %v1431
  %v1710 = vpop.f32.mrf.mxu0
  %v1711 = vadd.f32 %v1396, %v1710
  %v1712 = vpop.f32.mrf.mxu0
  %1713 = vmatprep.mubr.f32.mxu0 0.0
  %1714 = vmatmul.mubr.f32.gmra.mxu0 %v1434
  %v1715 = vpop.f32.mrf.mxu0
  %v1716 = vadd.f32 %v1396, %v1715
  %v1717 = vpop.f32.mrf.mxu0
  %1718 = vmatprep.mubr.f32.mxu0 0.0
  %1719 = vmatmul.mubr.f32.gmra.mxu0 %v1437
  %v1720 = vpop.f32.mrf.mxu0
  %v1721 = vadd.f32 %v1396, %v1720
  %v1722 = vpop.f32.mrf.mxu0
  %1723 = vmatprep.mubr.f32.mxu0 0.0
  %1724 = vmatmul.mubr.f32.gmra.mxu0 %v1440
  %v1725 = vpop.f32.mrf.mxu0
  %v1726 = vadd.f32 %v1396, %v1725
  %v1727 = vpop.f32.mrf.mxu0
  %1728 = vmatprep.mubr.f32.mxu0 0.0
  %1729 = vmatmul.mubr.f32.gmra.mxu0 %v1443
  %v1730 = vpop.f32.mrf.mxu0
  %v1731 = vadd.f32 %v1396, %v1730
  %v1732 = vpop.f32.mrf.mxu0
  %1733 = vmatprep.mubr.f32.mxu0 0.0
  %1734 = vmatmul.mubr.f32.gmra.mxu0 %v1446
  %v1735 = vpop.f32.mrf.mxu0
  %v1736 = vadd.f32 %v1396, %v1735
  %v1737 = vpop.f32.mrf.mxu0
  %1738 = vmatprep.mubr.f32.mxu0 0.0
  %1739 = vmatmul.mubr.f32.gmra.mxu0 %v1449
  %v1740 = vpop.f32.mrf.mxu0
  %v1741 = vadd.f32 %v1396, %v1740
  %v1742 = vpop.f32.mrf.mxu0
  %1743 = vmatprep.mubr.f32.mxu0 0.0
  %1744 = vmatmul.mubr.f32.gmra.mxu0 %v1452
  %v1745 = vpop.f32.mrf.mxu0
  %v1746 = vadd.f32 %v1396, %v1745
  %v1747 = vpop.f32.mrf.mxu0
  %1748 = vmatprep.mubr.f32.mxu0 0.0
  %1749 = vmatmul.mubr.f32.gmra.mxu0 %v1455
  %v1750 = vpop.f32.mrf.mxu0
  %v1751 = vadd.f32 %v1396, %v1750
  %v1752 = vpop.f32.mrf.mxu0
  %1753 = vmatprep.mubr.f32.mxu0 0.0
  %1754 = vmatmul.mubr.f32.gmra.mxu0 %v1458
  %v1755 = vpop.f32.mrf.mxu0
  %v1756 = vadd.f32 %v1396, %v1755
  %v1757 = vpop.f32.mrf.mxu0
  %1758 = vmatprep.mubr.f32.mxu0 0.0
  %1759 = vmatmul.mubr.f32.gmra.mxu0 %v1461
  %v1760 = vpop.f32.mrf.mxu0
  %v1761 = vadd.f32 %v1396, %v1760
  %v1762 = vpop.f32.mrf.mxu0
  %1763 = vmatprep.mubr.f32.mxu0 0.0
  %1764 = vmatmul.mubr.f32.gmra.mxu0 %v1464
  %v1765 = vpop.f32.mrf.mxu0
  %v1766 = vadd.f32 %v1396, %v1765
  %v1767 = vpop.f32.mrf.mxu0
  %1768 = vmatprep.mubr.f32.mxu0 0.0
  %1769 = vmatmul.mubr.f32.gmra.mxu0 %v1467
  %v1770 = vpop.f32.mrf.mxu0
  %v1771 = vadd.f32 %v1396, %v1770
  %v1772 = vpop.f32.mrf.mxu0
  %1773 = vmatprep.mubr.f32.mxu0 0.0
  %1774 = vmatmul.mubr.f32.gmra.mxu0 %v1470
  %v1775 = vpop.f32.mrf.mxu0
  %v1776 = vadd.f32 %v1396, %v1775
  %v1777 = vpop.f32.mrf.mxu0
  %1778 = vmatprep.mubr.f32.mxu0 0.0
  %1779 = vmatmul.mubr.f32.gmra.mxu0 %v1473
  %v1780 = vpop.f32.mrf.mxu0
  %v1781 = vadd.f32 %v1396, %v1780
  %v1782 = vpop.f32.mrf.mxu0
  %1783 = vmatprep.mubr.f32.mxu0 0.0
  %1784 = vmatmul.mubr.f32.gmra.mxu0 %v1476
  %v1785 = vpop.f32.mrf.mxu0
  %v1786 = vadd.f32 %v1396, %v1785
  %v1787 = vpop.f32.mrf.mxu0
  %1788 = vmatprep.mubr.f32.mxu0 0.0
  %1789 = vmatmul.mubr.f32.gmra.mxu0 %v1479
  %v1790 = vpop.f32.mrf.mxu0
  %v1791 = vadd.f32 %v1396, %v1790
  %v1792 = vpop.f32.mrf.mxu0
  %1793 = vmatprep.mubr.f32.mxu0 0.0
  %1794 = vmatmul.mubr.f32.gmra.mxu0 %v1482
  %v1795 = vpop.f32.mrf.mxu0
  %v1796 = vadd.f32 %v1396, %v1795
  %v1797 = vpop.f32.mrf.mxu0
  %1798 = vmatprep.mubr.f32.mxu0 0.0
  %1799 = vmatmul.mubr.f32.gmra.mxu0 %v1485
  %v1800 = vpop.f32.mrf.mxu0
  %v1801 = vadd.f32 %v1396, %v1800
  %v1802 = vpop.f32.mrf.mxu0
  %1803 = vmatprep.mubr.f32.mxu0 0.0
  %1804 = vmatmul.mubr.f32.gmra.mxu0 %v1488
  %v1805 = vpop.f32.mrf.mxu0
  %v1806 = vadd.f32 %v1396, %v1805
  %v1807 = vpop.f32.mrf.mxu0
  %1808 = vmatprep.mubr.f32.mxu0 0.0
  %1809 = vmatmul.mubr.f32.gmra.mxu0 %v1491
  %v1810 = vpop.f32.mrf.mxu0
  %v1811 = vadd.f32 %v1396, %v1810
  %v1812 = vpop.f32.mrf.mxu0
  %1813 = vmatprep.mubr.f32.mxu0 0.0
  %1814 = vmatmul.mubr.f32.gmra.mxu0 %v1494
  %v1815 = vpop.f32.mrf.mxu0
  %v1816 = vadd.f32 %v1396, %v1815
  %v1817 = vpop.f32.mrf.mxu0
  %1818 = vmatprep.mubr.f32.mxu0 0.0
  %1819 = vmatmul.mubr.f32.gmra.mxu0 %v1497
  %v1820 = vpop.f32.mrf.mxu0
  %v1821 = vadd.f32 %v1396, %v1820
  %v1822 = vpop.f32.mrf.mxu0
  %1823 = vmatprep.mubr.f32.mxu0 0.0
  %1824 = vmatmul.mubr.f32.gmra.mxu0 %v1500
  %v1825 = vpop.f32.mrf.mxu0
  %v1826 = vadd.f32 %v1396, %v1825
  %v1827 = vpop.f32.mrf.mxu0
  %1828 = vmatprep.mubr.f32.mxu0 0.0
  %1829 = vmatmul.mubr.f32.gmra.mxu0 %v1503
  %v1830 = vpop.f32.mrf.mxu0
  %v1831 = vadd.f32 %v1396, %v1830
  %v1832 = vpop.f32.mrf.mxu0
  %1833 = vmatprep.mubr.f32.mxu0 0.0
  %1834 = vmatmul.mubr.f32.gmra.mxu0 %v1506
  %v1835 = vpop.f32.mrf.mxu0
  %v1836 = vadd.f32 %v1396, %v1835
  %v1837 = vpop.f32.mrf.mxu0
  %1838 = vmatprep.mubr.f32.mxu0 0.0
  %1839 = vmatmul.mubr.f32.gmra.mxu0 %v1509
  %v1840 = vpop.f32.mrf.mxu0
  %v1841 = vadd.f32 %v1396, %v1840
  %v1842 = vpop.f32.mrf.mxu0
  %1843 = vmatprep.mubr.f32.mxu0 0.0
  %1844 = vmatmul.mubr.f32.gmra.mxu0 %v1512
  %v1845 = vpop.f32.mrf.mxu0
  %v1846 = vadd.f32 %v1396, %v1845
  %v1847 = vpop.f32.mrf.mxu0
  %1848 = vmatprep.mubr.f32.mxu0 0.0
  %1849 = vmatmul.mubr.f32.gmra.mxu0 %v1515
  %v1850 = vpop.f32.mrf.mxu0
  %v1851 = vadd.f32 %v1396, %v1850
  %v1852 = vpop.f32.mrf.mxu0
  %1853 = vmatprep.mubr.f32.mxu0 0.0
  %1854 = vmatmul.mubr.f32.gmra.mxu0 %v1518
  %v1855 = vpop.f32.mrf.mxu0
  %v1856 = vadd.f32 %v1396, %v1855
  %v1857 = vpop.f32.mrf.mxu0
  %1858 = vmatprep.mubr.f32.mxu0 0.0
  %1859 = vmatmul.mubr.f32.gmra.mxu0 %v1521
  %v1860 = vpop.f32.mrf.mxu0
  %v1861 = vadd.f32 %v1396, %v1860
  %v1862 = vpop.f32.mrf.mxu0
  %1863 = vmatprep.mubr.f32.mxu0 0.0
  %1864 = vmatmul.mubr.f32.gmra.mxu0 %v1524
  %v1865 = vpop.f32.mrf.mxu0
  %v1866 = vadd.f32 %v1396, %v1865
  %v1867 = vpop.f32.mrf.mxu0
  %1868 = vmatprep.mubr.f32.mxu0 0.0
  %1869 = vmatmul.mubr.f32.gmra.mxu0 %v1527
  %v1870 = vpop.f32.mrf.mxu0
  %v1871 = vadd.f32 %v1396, %v1870
  %v1872 = vpop.f32.mrf.mxu0
  %1873 = vmatprep.mubr.f32.mxu0 0.0
  %1874 = vmatmul.mubr.f32.gmra.mxu0 %v1530
  %v1875 = vpop.f32.mrf.mxu0
  %v1876 = vadd.f32 %v1396, %v1875
  %v1877 = vpop.f32.mrf.mxu0
  %1878 = vmatprep.mubr.f32.mxu0 0.0
  %1879 = vmatmul.mubr.f32.gmra.mxu0 %v1533
  %v1880 = vpop.f32.mrf.mxu0
  %v1881 = vadd.f32 %v1396, %v1880
  %v1882 = vpop.f32.mrf.mxu0
  %1883 = vmatprep.mubr.f32.mxu0 0.0
  %1884 = vmatmul.mubr.f32.gmra.mxu0 %v1536
  %v1885 = vpop.f32.mrf.mxu0
  %v1886 = vadd.f32 %v1396, %v1885
  %v1887 = vpop.f32.mrf.mxu0
  %1888 = vmatprep.mubr.f32.mxu0 0.0
  %1889 = vmatmul.mubr.f32.gmra.mxu0 %v1539
  %v1890 = vpop.f32.mrf.mxu0
  %v1891 = vadd.f32 %v1396, %v1890
  %v1892 = vpop.f32.mrf.mxu0
  %1893 = vmatprep.mubr.f32.mxu0 0.0
  %1894 = vmatmul.mubr.f32.gmra.mxu0 %v1542
  %v1895 = vpop.f32.mrf.mxu0
  %v1896 = vadd.f32 %v1396, %v1895
  %v1897 = vpop.f32.mrf.mxu0
  %1898 = vmatprep.mubr.f32.mxu0 0.0
  %1899 = vmatmul.mubr.f32.gmra.mxu0 %v1545
  %v1900 = vpop.f32.mrf.mxu0
  %v1901 = vadd.f32 %v1396, %v1900
  %v1902 = vpop.f32.mrf.mxu0
  %1903 = vmatprep.mubr.f32.mxu0 0.0
  %1904 = vmatmul.mubr.f32.gmra.mxu0 %v1548
  %v1905 = vpop.f32.mrf.mxu0
  %v1906 = vadd.f32 %v1396, %v1905
  %v1907 = vpop.f32.mrf.mxu0
  %1908 = vmatprep.mubr.f32.mxu0 0.0
  %1909 = vmatmul.mubr.f32.gmra.mxu0 %v1551
  %v1910 = vpop.f32.mrf.mxu0
  %v1911 = vadd.f32 %v1396, %v1910
  %v1912 = vpop.f32.mrf.mxu0
  %1913 = vmatprep.mubr.f32.mxu0 0.0
  %1914 = vmatmul.mubr.f32.gmra.mxu0 %v1554
  %v1915 = vpop.f32.mrf.mxu0
  %v1916 = vadd.f32 %v1396, %v1915
  %v1917 = vpop.f32.mrf.mxu0
  %1918 = vmatprep.mubr.f32.mxu0 0.0
  %1919 = vmatmul.mubr.f32.gmra.mxu0 %v1557
  %v1920 = vpop.f32.mrf.mxu0
  %v1921 = vadd.f32 %v1396, %v1920
  %v1922 = vpop.f32.mrf.mxu0
  %1923 = vmatprep.mubr.f32.mxu0 0.0
  %1924 = vmatmul.mubr.f32.gmra.mxu0 %v1560
  %v1925 = vpop.f32.mrf.mxu0
  %v1926 = vadd.f32 %v1396, %v1925
  %v1927 = vpop.f32.mrf.mxu0
  %1928 = vmatprep.mubr.f32.mxu0 0.0
  %1929 = vmatmul.mubr.f32.gmra.mxu0 %v1563
  %v1930 = vpop.f32.mrf.mxu0
  %v1931 = vadd.f32 %v1396, %v1930
  %v1932 = vpop.f32.mrf.mxu0
  %1933 = vmatprep.mubr.f32.mxu0 0.0
  %1934 = vmatmul.mubr.f32.gmra.mxu0 %v1566
  %v1935 = vpop.f32.mrf.mxu0
  %v1936 = vadd.f32 %v1396, %v1935
  %v1937 = vpop.f32.mrf.mxu0
  %1938 = vmatprep.mubr.f32.mxu0 0.0
  %1939 = vmatmul.mubr.f32.gmra.mxu0 %v1569
  %v1940 = vpop.f32.mrf.mxu0
  %v1941 = vadd.f32 %v1396, %v1940
  %v1942 = vpop.f32.mrf.mxu0
  %1943 = vmatprep.mubr.f32.mxu0 0.0
  %1944 = vmatmul.mubr.f32.gmra.mxu0 %v1572
  %v1945 = vpop.f32.mrf.mxu0
  %v1946 = vadd.f32 %v1396, %v1945
  %v1947 = vpop.f32.mrf.mxu0
  %1948 = vmatprep.mubr.f32.mxu0 0.0
  %1949 = vmatmul.mubr.f32.gmra.mxu0 %v1575
  %v1950 = vpop.f32.mrf.mxu0
  %v1951 = vadd.f32 %v1396, %v1950
  %v1952 = vpop.f32.mrf.mxu0
  %1953 = vmatprep.mubr.f32.mxu0 0.0
  %1954 = vmatmul.mubr.f32.gmra.mxu0 %v1578
  %v1955 = vpop.f32.mrf.mxu0
  %v1956 = vadd.f32 %v1396, %v1955
  %v1957 = vpop.f32.mrf.mxu0
  %1958 = vmatprep.mubr.f32.mxu0 0.0
  %1959 = vmatmul.mubr.f32.gmra.mxu0 %v1581
  %v1960 = vpop.f32.mrf.mxu0
  %v1961 = vadd.f32 %v1396, %v1960
  %v1962 = vpop.f32.mrf.mxu0
  %1963 = vmatprep.mubr.f32.mxu0 0.0
  %1964 = vmatmul.mubr.f32.gmra.mxu0 %v1584
  %v1965 = vpop.f32.mrf.mxu0
  %v1966 = vadd.f32 %v1396, %v1965
  %v1967 = vpop.f32.mrf.mxu0
  %1968 = vmatprep.mubr.f32.mxu0 0.0
  %1969 = vmatmul.mubr.f32.gmra.mxu0 %v1587
  %v1970 = vpop.f32.mrf.mxu0
  %v1971 = vadd.f32 %v1396, %v1970
  %v1972 = vpop.f32.mrf.mxu0
  %1973 = vdwg.mxu0
  %v1974 = vld [vmem:[%s5 + $0x1] sm:$0x1]
  %vm1975 = vcmp.gt.f32.partialorder %v1974, 0.5
  %v1976 = vxor.u32 %v1656, 2147483648
  %v1977 = vxor.u32 %v1661, 2147483648
  %v1978 = vxor.u32 %v1666, 2147483648
  %v1979 = vxor.u32 %v1671, 2147483648
  %v1980 = vxor.u32 %v1676, 2147483648
  %v1981 = vxor.u32 %v1681, 2147483648
  %v1982 = vxor.u32 %v1686, 2147483648
  %v1983 = vxor.u32 %v1691, 2147483648
  %v1984 = vxor.u32 %v1696, 2147483648
  %v1985 = vxor.u32 %v1701, 2147483648
  %v1986 = vxor.u32 %v1706, 2147483648
  %v1987 = vxor.u32 %v1711, 2147483648
  %v1988 = vxor.u32 %v1716, 2147483648
  %v1989 = vxor.u32 %v1721, 2147483648
  %v1990 = vxor.u32 %v1726, 2147483648
  %v1991 = vxor.u32 %v1731, 2147483648
  %v1992 = vxor.u32 %v1736, 2147483648
  %v1993 = vxor.u32 %v1741, 2147483648
  %v1994 = vxor.u32 %v1746, 2147483648
  %v1995 = vxor.u32 %v1751, 2147483648
  %v1996 = vxor.u32 %v1756, 2147483648
  %v1997 = vxor.u32 %v1761, 2147483648
  %v1998 = vxor.u32 %v1766, 2147483648
  %v1999 = vxor.u32 %v1771, 2147483648
  %v2000 = vxor.u32 %v1776, 2147483648
  %v2001 = vxor.u32 %v1781, 2147483648
  %v2002 = vxor.u32 %v1786, 2147483648
  %v2003 = vxor.u32 %v1791, 2147483648
  %v2004 = vxor.u32 %v1796, 2147483648
  %v2005 = vxor.u32 %v1801, 2147483648
  %v2006 = vxor.u32 %v1806, 2147483648
  %v2007 = vxor.u32 %v1811, 2147483648
  %v2008 = vxor.u32 %v1816, 2147483648
  %v2009 = vxor.u32 %v1821, 2147483648
  %v2010 = vxor.u32 %v1826, 2147483648
  %v2011 = vxor.u32 %v1831, 2147483648
  %v2012 = vxor.u32 %v1836, 2147483648
  %v2013 = vxor.u32 %v1841, 2147483648
  %v2014 = vxor.u32 %v1846, 2147483648
  %v2015 = vxor.u32 %v1851, 2147483648
  %v2016 = vxor.u32 %v1856, 2147483648
  %v2017 = vxor.u32 %v1861, 2147483648
  %v2018 = vxor.u32 %v1866, 2147483648
  %v2019 = vxor.u32 %v1871, 2147483648
  %v2020 = vxor.u32 %v1876, 2147483648
  %v2021 = vxor.u32 %v1881, 2147483648
  %v2022 = vxor.u32 %v1886, 2147483648
  %v2023 = vxor.u32 %v1891, 2147483648
  %v2024 = vxor.u32 %v1896, 2147483648
  %v2025 = vxor.u32 %v1901, 2147483648
  %v2026 = vxor.u32 %v1906, 2147483648
  %v2027 = vxor.u32 %v1911, 2147483648
  %v2028 = vxor.u32 %v1916, 2147483648
  %v2029 = vxor.u32 %v1921, 2147483648
  %v2030 = vxor.u32 %v1926, 2147483648
  %v2031 = vxor.u32 %v1931, 2147483648
  %v2032 = vxor.u32 %v1936, 2147483648
  %v2033 = vxor.u32 %v1941, 2147483648
  %v2034 = vxor.u32 %v1946, 2147483648
  %v2035 = vxor.u32 %v1951, 2147483648
  %v2036 = vxor.u32 %v1956, 2147483648
  %v2037 = vxor.u32 %v1961, 2147483648
  %v2038 = vxor.u32 %v1966, 2147483648
  %v2039 = vxor.u32 %v1971, 2147483648
  %v2040 = vmul.f32 %v1976, 1.442695
  %v2041 = vpow.pop %v2040
  %v2042 = vmul.f32 %v1977, 1.442695
  %v2043 = vpow.pop %v2042
  %v2044 = vmul.f32 %v1978, 1.442695
  %v2045 = vpow.pop %v2044
  %v2046 = vmul.f32 %v1979, 1.442695
  %v2047 = vpow.pop %v2046
  %v2048 = vmul.f32 %v1980, 1.442695
  %v2049 = vpow.pop %v2048
  %v2050 = vmul.f32 %v1981, 1.442695
  %v2051 = vpow.pop %v2050
  %v2052 = vmul.f32 %v1982, 1.442695
  %v2053 = vpow.pop %v2052
  %v2054 = vmul.f32 %v1983, 1.442695
  %v2055 = vpow.pop %v2054
  %v2056 = vmul.f32 %v1984, 1.442695
  %v2057 = vpow.pop %v2056
  %v2058 = vmul.f32 %v1985, 1.442695
  %v2059 = vpow.pop %v2058
  %v2060 = vmul.f32 %v1986, 1.442695
  %v2061 = vpow.pop %v2060
  %v2062 = vmul.f32 %v1987, 1.442695
  %v2063 = vpow.pop %v2062
  %v2064 = vmul.f32 %v1988, 1.442695
  %v2065 = vpow.pop %v2064
  %v2066 = vmul.f32 %v1989, 1.442695
  %v2067 = vpow.pop %v2066
  %v2068 = vmul.f32 %v1990, 1.442695
  %v2069 = vpow.pop %v2068
  %v2070 = vmul.f32 %v1991, 1.442695
  %v2071 = vpow.pop %v2070
  %v2072 = vmul.f32 %v1992, 1.442695
  %v2073 = vpow.pop %v2072
  %v2074 = vmul.f32 %v1993, 1.442695
  %v2075 = vpow.pop %v2074
  %v2076 = vmul.f32 %v1994, 1.442695
  %v2077 = vpow.pop %v2076
  %v2078 = vmul.f32 %v1995, 1.442695
  %v2079 = vpow.pop %v2078
  %v2080 = vmul.f32 %v1996, 1.442695
  %v2081 = vpow.pop %v2080
  %v2082 = vmul.f32 %v1997, 1.442695
  %v2083 = vpow.pop %v2082
  %v2084 = vmul.f32 %v1998, 1.442695
  %v2085 = vpow.pop %v2084
  %v2086 = vmul.f32 %v1999, 1.442695
  %v2087 = vpow.pop %v2086
  %v2088 = vmul.f32 %v2000, 1.442695
  %v2089 = vpow.pop %v2088
  %v2090 = vmul.f32 %v2001, 1.442695
  %v2091 = vpow.pop %v2090
  %v2092 = vmul.f32 %v2002, 1.442695
  %v2093 = vpow.pop %v2092
  %v2094 = vmul.f32 %v2003, 1.442695
  %v2095 = vpow.pop %v2094
  %v2096 = vmul.f32 %v2004, 1.442695
  %v2097 = vpow.pop %v2096
  %v2098 = vmul.f32 %v2005, 1.442695
  %v2099 = vpow.pop %v2098
  %v2100 = vmul.f32 %v2006, 1.442695
  %v2101 = vpow.pop %v2100
  %v2102 = vmul.f32 %v2007, 1.442695
  %v2103 = vpow.pop %v2102
  %v2104 = vmul.f32 %v2008, 1.442695
  %v2105 = vpow.pop %v2104
  %v2106 = vmul.f32 %v2009, 1.442695
  %v2107 = vpow.pop %v2106
  %v2108 = vmul.f32 %v2010, 1.442695
  %v2109 = vpow.pop %v2108
  %v2110 = vmul.f32 %v2011, 1.442695
  %v2111 = vpow.pop %v2110
  %v2112 = vmul.f32 %v2012, 1.442695
  %v2113 = vpow.pop %v2112
  %v2114 = vmul.f32 %v2013, 1.442695
  %v2115 = vpow.pop %v2114
  %v2116 = vmul.f32 %v2014, 1.442695
  %v2117 = vpow.pop %v2116
  %v2118 = vmul.f32 %v2015, 1.442695
  %v2119 = vpow.pop %v2118
  %v2120 = vmul.f32 %v2016, 1.442695
  %v2121 = vpow.pop %v2120
  %v2122 = vmul.f32 %v2017, 1.442695
  %v2123 = vpow.pop %v2122
  %v2124 = vmul.f32 %v2018, 1.442695
  %v2125 = vpow.pop %v2124
  %v2126 = vmul.f32 %v2019, 1.442695
  %v2127 = vpow.pop %v2126
  %v2128 = vmul.f32 %v2020, 1.442695
  %v2129 = vpow.pop %v2128
  %v2130 = vmul.f32 %v2021, 1.442695
  %v2131 = vpow.pop %v2130
  %v2132 = vmul.f32 %v2022, 1.442695
  %v2133 = vpow.pop %v2132
  %v2134 = vmul.f32 %v2023, 1.442695
  %v2135 = vpow.pop %v2134
  %v2136 = vmul.f32 %v2024, 1.442695
  %v2137 = vpow.pop %v2136
  %v2138 = vmul.f32 %v2025, 1.442695
  %v2139 = vpow.pop %v2138
  %v2140 = vmul.f32 %v2026, 1.442695
  %v2141 = vpow.pop %v2140
  %v2142 = vmul.f32 %v2027, 1.442695
  %v2143 = vpow.pop %v2142
  %v2144 = vmul.f32 %v2028, 1.442695
  %v2145 = vpow.pop %v2144
  %v2146 = vmul.f32 %v2029, 1.442695
  %v2147 = vpow.pop %v2146
  %v2148 = vmul.f32 %v2030, 1.442695
  %v2149 = vpow.pop %v2148
  %v2150 = vmul.f32 %v2031, 1.442695
  %v2151 = vpow.pop %v2150
  %v2152 = vmul.f32 %v2032, 1.442695
  %v2153 = vpow.pop %v2152
  %v2154 = vmul.f32 %v2033, 1.442695
  %v2155 = vpow.pop %v2154
  %v2156 = vmul.f32 %v2034, 1.442695
  %v2157 = vpow.pop %v2156
  %v2158 = vmul.f32 %v2035, 1.442695
  %v2159 = vpow.pop %v2158
  %v2160 = vmul.f32 %v2036, 1.442695
  %v2161 = vpow.pop %v2160
  %v2162 = vmul.f32 %v2037, 1.442695
  %v2163 = vpow.pop %v2162
  %v2164 = vmul.f32 %v2038, 1.442695
  %v2165 = vpow.pop %v2164
  %v2166 = vmul.f32 %v2039, 1.442695
  %v2167 = vpow.pop %v2166
  %v2168 = vadd.f32 %v2041, 1.0
  %v2169 = vadd.f32 %v2043, 1.0
  %v2170 = vadd.f32 %v2045, 1.0
  %v2171 = vadd.f32 %v2047, 1.0
  %v2172 = vadd.f32 %v2049, 1.0
  %v2173 = vadd.f32 %v2051, 1.0
  %v2174 = vadd.f32 %v2053, 1.0
  %v2175 = vadd.f32 %v2055, 1.0
  %v2176 = vadd.f32 %v2057, 1.0
  %v2177 = vadd.f32 %v2059, 1.0
  %v2178 = vadd.f32 %v2061, 1.0
  %v2179 = vadd.f32 %v2063, 1.0
  %v2180 = vadd.f32 %v2065, 1.0
  %v2181 = vadd.f32 %v2067, 1.0
  %v2182 = vadd.f32 %v2069, 1.0
  %v2183 = vadd.f32 %v2071, 1.0
  %v2184 = vadd.f32 %v2073, 1.0
  %v2185 = vadd.f32 %v2075, 1.0
  %v2186 = vadd.f32 %v2077, 1.0
  %v2187 = vadd.f32 %v2079, 1.0
  %v2188 = vadd.f32 %v2081, 1.0
  %v2189 = vadd.f32 %v2083, 1.0
  %v2190 = vadd.f32 %v2085, 1.0
  %v2191 = vadd.f32 %v2087, 1.0
  %v2192 = vadd.f32 %v2089, 1.0
  %v2193 = vadd.f32 %v2091, 1.0
  %v2194 = vadd.f32 %v2093, 1.0
  %v2195 = vadd.f32 %v2095, 1.0
  %v2196 = vadd.f32 %v2097, 1.0
  %v2197 = vadd.f32 %v2099, 1.0
  %v2198 = vadd.f32 %v2101, 1.0
  %v2199 = vadd.f32 %v2103, 1.0
  %v2200 = vadd.f32 %v2105, 1.0
  %v2201 = vadd.f32 %v2107, 1.0
  %v2202 = vadd.f32 %v2109, 1.0
  %v2203 = vadd.f32 %v2111, 1.0
  %v2204 = vadd.f32 %v2113, 1.0
  %v2205 = vadd.f32 %v2115, 1.0
  %v2206 = vadd.f32 %v2117, 1.0
  %v2207 = vadd.f32 %v2119, 1.0
  %v2208 = vadd.f32 %v2121, 1.0
  %v2209 = vadd.f32 %v2123, 1.0
  %v2210 = vadd.f32 %v2125, 1.0
  %v2211 = vadd.f32 %v2127, 1.0
  %v2212 = vadd.f32 %v2129, 1.0
  %v2213 = vadd.f32 %v2131, 1.0
  %v2214 = vadd.f32 %v2133, 1.0
  %v2215 = vadd.f32 %v2135, 1.0
  %v2216 = vadd.f32 %v2137, 1.0
  %v2217 = vadd.f32 %v2139, 1.0
  %v2218 = vadd.f32 %v2141, 1.0
  %v2219 = vadd.f32 %v2143, 1.0
  %v2220 = vadd.f32 %v2145, 1.0
  %v2221 = vadd.f32 %v2147, 1.0
  %v2222 = vadd.f32 %v2149, 1.0
  %v2223 = vadd.f32 %v2151, 1.0
  %v2224 = vadd.f32 %v2153, 1.0
  %v2225 = vadd.f32 %v2155, 1.0
  %v2226 = vadd.f32 %v2157, 1.0
  %v2227 = vadd.f32 %v2159, 1.0
  %v2228 = vadd.f32 %v2161, 1.0
  %v2229 = vadd.f32 %v2163, 1.0
  %v2230 = vadd.f32 %v2165, 1.0
  %v2231 = vadd.f32 %v2167, 1.0
  %v2232 = vrcp.pop %v2168
  %v2233 = vmul.f32 1.0, %v2232
  %v2234 = vrcp.pop %v2169
  %v2235 = vmul.f32 1.0, %v2234
  %v2236 = vrcp.pop %v2170
  %v2237 = vmul.f32 1.0, %v2236
  %v2238 = vrcp.pop %v2171
  %v2239 = vmul.f32 1.0, %v2238
  %v2240 = vrcp.pop %v2172
  %v2241 = vmul.f32 1.0, %v2240
  %v2242 = vrcp.pop %v2173
  %v2243 = vmul.f32 1.0, %v2242
  %v2244 = vrcp.pop %v2174
  %v2245 = vmul.f32 1.0, %v2244
  %v2246 = vrcp.pop %v2175
  %v2247 = vmul.f32 1.0, %v2246
  %v2248 = vrcp.pop %v2176
  %v2249 = vmul.f32 1.0, %v2248
  %v2250 = vrcp.pop %v2177
  %v2251 = vmul.f32 1.0, %v2250
  %v2252 = vrcp.pop %v2178
  %v2253 = vmul.f32 1.0, %v2252
  %v2254 = vrcp.pop %v2179
  %v2255 = vmul.f32 1.0, %v2254
  %v2256 = vrcp.pop %v2180
  %v2257 = vmul.f32 1.0, %v2256
  %v2258 = vrcp.pop %v2181
  %v2259 = vmul.f32 1.0, %v2258
  %v2260 = vrcp.pop %v2182
  %v2261 = vmul.f32 1.0, %v2260
  %v2262 = vrcp.pop %v2183
  %v2263 = vmul.f32 1.0, %v2262
  %v2264 = vrcp.pop %v2184
  %v2265 = vmul.f32 1.0, %v2264
  %v2266 = vrcp.pop %v2185
  %v2267 = vmul.f32 1.0, %v2266
  %v2268 = vrcp.pop %v2186
  %v2269 = vmul.f32 1.0, %v2268
  %v2270 = vrcp.pop %v2187
  %v2271 = vmul.f32 1.0, %v2270
  %v2272 = vrcp.pop %v2188
  %v2273 = vmul.f32 1.0, %v2272
  %v2274 = vrcp.pop %v2189
  %v2275 = vmul.f32 1.0, %v2274
  %v2276 = vrcp.pop %v2190
  %v2277 = vmul.f32 1.0, %v2276
  %v2278 = vrcp.pop %v2191
  %v2279 = vmul.f32 1.0, %v2278
  %v2280 = vrcp.pop %v2192
  %v2281 = vmul.f32 1.0, %v2280
  %v2282 = vrcp.pop %v2193
  %v2283 = vmul.f32 1.0, %v2282
  %v2284 = vrcp.pop %v2194
  %v2285 = vmul.f32 1.0, %v2284
  %v2286 = vrcp.pop %v2195
  %v2287 = vmul.f32 1.0, %v2286
  %v2288 = vrcp.pop %v2196
  %v2289 = vmul.f32 1.0, %v2288
  %v2290 = vrcp.pop %v2197
  %v2291 = vmul.f32 1.0, %v2290
  %v2292 = vrcp.pop %v2198
  %v2293 = vmul.f32 1.0, %v2292
  %v2294 = vrcp.pop %v2199
  %v2295 = vmul.f32 1.0, %v2294
  %v2296 = vrcp.pop %v2200
  %v2297 = vmul.f32 1.0, %v2296
  %v2298 = vrcp.pop %v2201
  %v2299 = vmul.f32 1.0, %v2298
  %v2300 = vrcp.pop %v2202
  %v2301 = vmul.f32 1.0, %v2300
  %v2302 = vrcp.pop %v2203
  %v2303 = vmul.f32 1.0, %v2302
  %v2304 = vrcp.pop %v2204
  %v2305 = vmul.f32 1.0, %v2304
  %v2306 = vrcp.pop %v2205
  %v2307 = vmul.f32 1.0, %v2306
  %v2308 = vrcp.pop %v2206
  %v2309 = vmul.f32 1.0, %v2308
  %v2310 = vrcp.pop %v2207
  %v2311 = vmul.f32 1.0, %v2310
  %v2312 = vrcp.pop %v2208
  %v2313 = vmul.f32 1.0, %v2312
  %v2314 = vrcp.pop %v2209
  %v2315 = vmul.f32 1.0, %v2314
  %v2316 = vrcp.pop %v2210
  %v2317 = vmul.f32 1.0, %v2316
  %v2318 = vrcp.pop %v2211
  %v2319 = vmul.f32 1.0, %v2318
  %v2320 = vrcp.pop %v2212
  %v2321 = vmul.f32 1.0, %v2320
  %v2322 = vrcp.pop %v2213
  %v2323 = vmul.f32 1.0, %v2322
  %v2324 = vrcp.pop %v2214
  %v2325 = vmul.f32 1.0, %v2324
  %v2326 = vrcp.pop %v2215
  %v2327 = vmul.f32 1.0, %v2326
  %v2328 = vrcp.pop %v2216
  %v2329 = vmul.f32 1.0, %v2328
  %v2330 = vrcp.pop %v2217
  %v2331 = vmul.f32 1.0, %v2330
  %v2332 = vrcp.pop %v2218
  %v2333 = vmul.f32 1.0, %v2332
  %v2334 = vrcp.pop %v2219
  %v2335 = vmul.f32 1.0, %v2334
  %v2336 = vrcp.pop %v2220
  %v2337 = vmul.f32 1.0, %v2336
  %v2338 = vrcp.pop %v2221
  %v2339 = vmul.f32 1.0, %v2338
  %v2340 = vrcp.pop %v2222
  %v2341 = vmul.f32 1.0, %v2340
  %v2342 = vrcp.pop %v2223
  %v2343 = vmul.f32 1.0, %v2342
  %v2344 = vrcp.pop %v2224
  %v2345 = vmul.f32 1.0, %v2344
  %v2346 = vrcp.pop %v2225
  %v2347 = vmul.f32 1.0, %v2346
  %v2348 = vrcp.pop %v2226
  %v2349 = vmul.f32 1.0, %v2348
  %v2350 = vrcp.pop %v2227
  %v2351 = vmul.f32 1.0, %v2350
  %v2352 = vrcp.pop %v2228
  %v2353 = vmul.f32 1.0, %v2352
  %v2354 = vrcp.pop %v2229
  %v2355 = vmul.f32 1.0, %v2354
  %v2356 = vrcp.pop %v2230
  %v2357 = vmul.f32 1.0, %v2356
  %v2358 = vrcp.pop %v2231
  %v2359 = vmul.f32 1.0, %v2358
  %v2360 = vsel %vm1975, 1, 0
  %v2361 = vlaneseq
  %v2362 = vshrl.u32 %v2361, 7
  %v2363 = vsub.s32 0, %v2362
  %v2364 = vrot.slane %v2360, %v2363
  %vm2365 = vcmp.eq.s32.totalorder %v2364, 1
  %v2366 = vsel %vm2365, %v2233, %v1656
  %v2367 = vsel %vm2365, %v2235, %v1661
  %v2368 = vsel %vm2365, %v2237, %v1666
  %v2369 = vsel %vm2365, %v2239, %v1671
  %v2370 = vsel %vm2365, %v2241, %v1676
  %v2371 = vsel %vm2365, %v2243, %v1681
  %v2372 = vsel %vm2365, %v2245, %v1686
  %v2373 = vsel %vm2365, %v2247, %v1691
  %v2374 = vsel %vm2365, %v2249, %v1696
  %v2375 = vsel %vm2365, %v2251, %v1701
  %v2376 = vsel %vm2365, %v2253, %v1706
  %v2377 = vsel %vm2365, %v2255, %v1711
  %v2378 = vsel %vm2365, %v2257, %v1716
  %v2379 = vsel %vm2365, %v2259, %v1721
  %v2380 = vsel %vm2365, %v2261, %v1726
  %v2381 = vsel %vm2365, %v2263, %v1731
  %v2382 = vsel %vm2365, %v2265, %v1736
  %v2383 = vsel %vm2365, %v2267, %v1741
  %v2384 = vsel %vm2365, %v2269, %v1746
  %v2385 = vsel %vm2365, %v2271, %v1751
  %v2386 = vsel %vm2365, %v2273, %v1756
  %v2387 = vsel %vm2365, %v2275, %v1761
  %v2388 = vsel %vm2365, %v2277, %v1766
  %v2389 = vsel %vm2365, %v2279, %v1771
  %v2390 = vsel %vm2365, %v2281, %v1776
  %v2391 = vsel %vm2365, %v2283, %v1781
  %v2392 = vsel %vm2365, %v2285, %v1786
  %v2393 = vsel %vm2365, %v2287, %v1791
  %v2394 = vsel %vm2365, %v2289, %v1796
  %v2395 = vsel %vm2365, %v2291, %v1801
  %v2396 = vsel %vm2365, %v2293, %v1806
  %v2397 = vsel %vm2365, %v2295, %v1811
  %v2398 = vsel %vm2365, %v2297, %v1816
  %v2399 = vsel %vm2365, %v2299, %v1821
  %v2400 = vsel %vm2365, %v2301, %v1826
  %v2401 = vsel %vm2365, %v2303, %v1831
  %v2402 = vsel %vm2365, %v2305, %v1836
  %v2403 = vsel %vm2365, %v2307, %v1841
  %v2404 = vsel %vm2365, %v2309, %v1846
  %v2405 = vsel %vm2365, %v2311, %v1851
  %v2406 = vsel %vm2365, %v2313, %v1856
  %v2407 = vsel %vm2365, %v2315, %v1861
  %v2408 = vsel %vm2365, %v2317, %v1866
  %v2409 = vsel %vm2365, %v2319, %v1871
  %v2410 = vsel %vm2365, %v2321, %v1876
  %v2411 = vsel %vm2365, %v2323, %v1881
  %v2412 = vsel %vm2365, %v2325, %v1886
  %v2413 = vsel %vm2365, %v2327, %v1891
  %v2414 = vsel %vm2365, %v2329, %v1896
  %v2415 = vsel %vm2365, %v2331, %v1901
  %v2416 = vsel %vm2365, %v2333, %v1906
  %v2417 = vsel %vm2365, %v2335, %v1911
  %v2418 = vsel %vm2365, %v2337, %v1916
  %v2419 = vsel %vm2365, %v2339, %v1921
  %v2420 = vsel %vm2365, %v2341, %v1926
  %v2421 = vsel %vm2365, %v2343, %v1931
  %v2422 = vsel %vm2365, %v2345, %v1936
  %v2423 = vsel %vm2365, %v2347, %v1941
  %v2424 = vsel %vm2365, %v2349, %v1946
  %v2425 = vsel %vm2365, %v2351, %v1951
  %v2426 = vsel %vm2365, %v2353, %v1956
  %v2427 = vsel %vm2365, %v2355, %v1961
  %v2428 = vsel %vm2365, %v2357, %v1966
  %v2429 = vsel %vm2365, %v2359, %v1971
  %2430 = vst.msk [vmem:[%s6] sm:$0xff] %vm95, %v2366
  %2431 = vst.msk [vmem:[%s6 + $0x8] sm:$0xff] %vm95, %v2367
  %2432 = vst.msk [vmem:[%s6 + $0x10] sm:$0xff] %vm95, %v2368
  %2433 = vst.msk [vmem:[%s6 + $0x18] sm:$0xff] %vm95, %v2369
  %2434 = vst.msk [vmem:[%s6 + $0x20] sm:$0xff] %vm95, %v2370
  %2435 = vst.msk [vmem:[%s6 + $0x28] sm:$0xff] %vm95, %v2371
  %2436 = vst.msk [vmem:[%s6 + $0x30] sm:$0xff] %vm95, %v2372
  %2437 = vst.msk [vmem:[%s6 + $0x38] sm:$0xff] %vm95, %v2373
  %2438 = vst.msk [vmem:[%s6 + $0x40] sm:$0xff] %vm95, %v2374
  %2439 = vst.msk [vmem:[%s6 + $0x48] sm:$0xff] %vm95, %v2375
  %2440 = vst.msk [vmem:[%s6 + $0x50] sm:$0xff] %vm95, %v2376
  %2441 = vst.msk [vmem:[%s6 + $0x58] sm:$0xff] %vm95, %v2377
  %2442 = vst.msk [vmem:[%s6 + $0x60] sm:$0xff] %vm95, %v2378
  %2443 = vst.msk [vmem:[%s6 + $0x68] sm:$0xff] %vm95, %v2379
  %2444 = vst.msk [vmem:[%s6 + $0x70] sm:$0xff] %vm95, %v2380
  %2445 = vst.msk [vmem:[%s6 + $0x78] sm:$0xff] %vm95, %v2381
  %2446 = vst.msk [vmem:[%s6 + $0x80] sm:$0xff] %vm95, %v2382
  %2447 = vst.msk [vmem:[%s6 + $0x88] sm:$0xff] %vm95, %v2383
  %2448 = vst.msk [vmem:[%s6 + $0x90] sm:$0xff] %vm95, %v2384
  %2449 = vst.msk [vmem:[%s6 + $0x98] sm:$0xff] %vm95, %v2385
  %2450 = vst.msk [vmem:[%s6 + $0xa0] sm:$0xff] %vm95, %v2386
  %2451 = vst.msk [vmem:[%s6 + $0xa8] sm:$0xff] %vm95, %v2387
  %2452 = vst.msk [vmem:[%s6 + $0xb0] sm:$0xff] %vm95, %v2388
  %2453 = vst.msk [vmem:[%s6 + $0xb8] sm:$0xff] %vm95, %v2389
  %2454 = vst.msk [vmem:[%s6 + $0xc0] sm:$0xff] %vm95, %v2390
  %2455 = vst.msk [vmem:[%s6 + $0xc8] sm:$0xff] %vm95, %v2391
  %2456 = vst.msk [vmem:[%s6 + $0xd0] sm:$0xff] %vm95, %v2392
  %2457 = vst.msk [vmem:[%s6 + $0xd8] sm:$0xff] %vm95, %v2393
  %2458 = vst.msk [vmem:[%s6 + $0xe0] sm:$0xff] %vm95, %v2394
  %2459 = vst.msk [vmem:[%s6 + $0xe8] sm:$0xff] %vm95, %v2395
  %2460 = vst.msk [vmem:[%s6 + $0xf0] sm:$0xff] %vm95, %v2396
  %2461 = vst.msk [vmem:[%s6 + $0xf8] sm:$0xff] %vm95, %v2397
  %2462 = vst.msk [vmem:[%s6 + $0x100] sm:$0xff] %vm95, %v2398
  %2463 = vst.msk [vmem:[%s6 + $0x108] sm:$0xff] %vm95, %v2399
  %2464 = vst.msk [vmem:[%s6 + $0x110] sm:$0xff] %vm95, %v2400
  %2465 = vst.msk [vmem:[%s6 + $0x118] sm:$0xff] %vm95, %v2401
  %2466 = vst.msk [vmem:[%s6 + $0x120] sm:$0xff] %vm95, %v2402
  %2467 = vst.msk [vmem:[%s6 + $0x128] sm:$0xff] %vm95, %v2403
  %2468 = vst.msk [vmem:[%s6 + $0x130] sm:$0xff] %vm95, %v2404
  %2469 = vst.msk [vmem:[%s6 + $0x138] sm:$0xff] %vm95, %v2405
  %2470 = vst.msk [vmem:[%s6 + $0x140] sm:$0xff] %vm95, %v2406
  %2471 = vst.msk [vmem:[%s6 + $0x148] sm:$0xff] %vm95, %v2407
  %2472 = vst.msk [vmem:[%s6 + $0x150] sm:$0xff] %vm95, %v2408
  %2473 = vst.msk [vmem:[%s6 + $0x158] sm:$0xff] %vm95, %v2409
  %2474 = vst.msk [vmem:[%s6 + $0x160] sm:$0xff] %vm95, %v2410
  %2475 = vst.msk [vmem:[%s6 + $0x168] sm:$0xff] %vm95, %v2411
  %2476 = vst.msk [vmem:[%s6 + $0x170] sm:$0xff] %vm95, %v2412
  %2477 = vst.msk [vmem:[%s6 + $0x178] sm:$0xff] %vm95, %v2413
  %2478 = vst.msk [vmem:[%s6 + $0x180] sm:$0xff] %vm95, %v2414
  %2479 = vst.msk [vmem:[%s6 + $0x188] sm:$0xff] %vm95, %v2415
  %2480 = vst.msk [vmem:[%s6 + $0x190] sm:$0xff] %vm95, %v2416
  %2481 = vst.msk [vmem:[%s6 + $0x198] sm:$0xff] %vm95, %v2417
  %2482 = vst.msk [vmem:[%s6 + $0x1a0] sm:$0xff] %vm95, %v2418
  %2483 = vst.msk [vmem:[%s6 + $0x1a8] sm:$0xff] %vm95, %v2419
  %2484 = vst.msk [vmem:[%s6 + $0x1b0] sm:$0xff] %vm95, %v2420
  %2485 = vst.msk [vmem:[%s6 + $0x1b8] sm:$0xff] %vm95, %v2421
  %2486 = vst.msk [vmem:[%s6 + $0x1c0] sm:$0xff] %vm95, %v2422
  %2487 = vst.msk [vmem:[%s6 + $0x1c8] sm:$0xff] %vm95, %v2423
  %2488 = vst.msk [vmem:[%s6 + $0x1d0] sm:$0xff] %vm95, %v2424
  %2489 = vst.msk [vmem:[%s6 + $0x1d8] sm:$0xff] %vm95, %v2425
  %2490 = vst.msk [vmem:[%s6 + $0x1e0] sm:$0xff] %vm95, %v2426
  %2491 = vst.msk [vmem:[%s6 + $0x1e8] sm:$0xff] %vm95, %v2427
  %2492 = vst.msk [vmem:[%s6 + $0x1f0] sm:$0xff] %vm95, %v2428
  %2493 = vst.msk [vmem:[%s6 + $0x1f8] sm:$0xff] %vm95, %v2429
  // Predicated region
  $region26: #{_rae_pallas_call.1} parent=0 // pred_check
    _
  $region27: #{_rae_pallas_call.1} parent=0 // pred_check_branch
    %2495 = sbr.rel (0) target = $region29
  $region28: #{_rae_pallas_call.1} parent=0 // pred_region
    _
  $region29: #{_rae_pallas_call.1} parent=0 // pred_fallthru
    _
  // Predicated region
  $region30: #{_rae_pallas_call.1} parent=0 // pred_check
    _
  $region31: #{_rae_pallas_call.1} parent=0 // pred_check_branch
    %2497 = sbr.rel (0) target = $region33
  $region32: #{_rae_pallas_call.1} parent=0 // pred_region
    _
  $region33: #{_rae_pallas_call.1} parent=0 // pred_fallthru
    _

</llo_original>
